<compile_context>
chip_gen: v6e
topology: v6e:2x2x1
jax: 0.10.0
libtpu: 0.0.40
codegen_flags: <defaults>
</compile_context>

<pallas_src>
import jax
import jax.numpy as jnp
from jax import lax
from jax.experimental import pallas as pl
from jax.experimental.pallas import tpu as pltpu

EXPANSION = 4
BN_EPS = 1e-5
_LANE = 128
_VMEM_LIMIT = 32 * 1024 * 1024  # conservative; fits v5e/v6e/v7x


def _round_up(x, m):
    return ((x + m - 1) // m) * m


# ----------------------------------------------------------------------------
# Kernel 1: tiled out = relu(x @ w + bias)          (stages 1)
# Kernel 2: tiled out = relu(x @ w + bias + res)    (stage 3)
# ----------------------------------------------------------------------------
def _matmul_bias_relu_kernel(x_ref, w_ref, b_ref, o_ref, acc_ref):
    k = pl.program_id(2)

    @pl.when(k == 0)
    def _():
        acc_ref[...] = jnp.zeros_like(acc_ref)

    acc_ref[...] += jnp.dot(x_ref[...], w_ref[...],
                            preferred_element_type=jnp.float32)

    @pl.when(k == pl.num_programs(2) - 1)
    def _():
        out = acc_ref[...] + b_ref[...]
        o_ref[...] = jnp.maximum(out, 0.0).astype(o_ref.dtype)


def _matmul_bias_res_relu_kernel(x_ref, w_ref, b_ref, r_ref, o_ref, acc_ref):
    k = pl.program_id(2)

    @pl.when(k == 0)
    def _():
        acc_ref[...] = jnp.zeros_like(acc_ref)

    acc_ref[...] += jnp.dot(x_ref[...], w_ref[...],
                            preferred_element_type=jnp.float32)

    @pl.when(k == pl.num_programs(2) - 1)
    def _():
        out = acc_ref[...] + b_ref[...] + r_ref[...].astype(jnp.float32)
        o_ref[...] = jnp.maximum(out, 0.0).astype(o_ref.dtype)


def fused_matmul_bn_relu(x, w, bias, residual=None, *, out_dtype=jnp.float32):
    """relu(x @ w + bias [+ residual]).

    x: (M, Kx) float; w: (K, N) bf16 with K, N multiples of 128 and Kx <= K
    (BN scale pre-folded into w); bias: (1, N) f32; residual: optional f32 with
    shape <= (M, N).  Returns (M, N) in out_dtype (N stays channel-padded).
    """
    M, Kx = x.shape
    K, N = w.shape
    assert K % _LANE == 0 and N % _LANE == 0 and Kx <= K

    tn = 256 if N % 256 == 0 else 128
    tk = next(t for t in (512, 256, 128) if K % t == 0)
    tm = min(512, _round_up(M, 16))
    Mp = _round_up(M, tm)

    xp = x.astype(jnp.bfloat16)
    if (Mp, K) != (M, Kx):
        xp = jnp.pad(xp, ((0, Mp - M), (0, K - Kx)))

    in_specs = [
        pl.BlockSpec((tm, tk), lambda i, j, k: (i, k)),
        pl.BlockSpec((tk, tn), lambda i, j, k: (k, j)),
        pl.BlockSpec((1, tn), lambda i, j, k: (0, j)),
    ]
    args = [xp, w, bias]
    if residual is not None:
        rp = residual.astype(jnp.float32)
        rM, rN = rp.shape
        if (Mp, N) != (rM, rN):
            rp = jnp.pad(rp, ((0, Mp - rM), (0, N - rN)))
        in_specs.append(pl.BlockSpec((tm, tn), lambda i, j, k: (i, j)))
        args.append(rp)
        kernel = _matmul_bias_res_relu_kernel
    else:
        kernel = _matmul_bias_relu_kernel

    out = pl.pallas_call(
        kernel,
        out_shape=jax.ShapeDtypeStruct((Mp, N), out_dtype),
        grid=(Mp // tm, N // tn, K // tk),
        in_specs=in_specs,
        out_specs=pl.BlockSpec((tm, tn), lambda i, j, k: (i, j)),
        scratch_shapes=[pltpu.VMEM((tm, tn), jnp.float32)],
        compiler_params=pltpu.CompilerParams(
            dimension_semantics=("parallel", "parallel", "arbitrary"),
            vmem_limit_bytes=_VMEM_LIMIT),
    )(*args)
    return out[:M] if Mp != M else out


# ----------------------------------------------------------------------------
# Kernel 3: 3x3 conv (stride 1, pad 1) + BN + ReLU as 9 accumulated shifted
# matmuls.  Grid = (N, H, dy); dx handled in-kernel on one padded image row.
# ----------------------------------------------------------------------------
def _conv3x3_bn_relu_kernel(x_ref, w_ref, b_ref, o_ref, acc_ref):
    dy = pl.program_id(2)
    w_out = o_ref.shape[0]

    @pl.when(dy == 0)
    def _():
        acc_ref[...] = jnp.zeros_like(acc_ref)

    x = x_ref[...]                    # (W + 2, C) bf16, one padded image row
    acc = acc_ref[...]
    for dx in range(3):
        acc = acc + jnp.dot(x[dx:dx + w_out, :], w_ref[dy * 3 + dx],
                            preferred_element_type=jnp.float32)
    acc_ref[...] = acc

    @pl.when(dy == pl.num_programs(2) - 1)
    def _():
        o_ref[...] = jnp.maximum(acc + b_ref[...], 0.0).astype(o_ref.dtype)


def conv3x3_bn_relu(x_pad, w9, bias, *, out_dtype=jnp.bfloat16):
    """x_pad: (N, H+2, W+2, C) bf16 spatially padded; w9: (9, C, C2) bf16
    (BN scale pre-folded); bias: (1, C2) f32.  Returns (N, H, W, C2)."""
    n, hp2, wp2, c = x_pad.shape
    h, w = hp2 - 2, wp2 - 2
    c2 = w9.shape[-1]
    return pl.pallas_call(
        _conv3x3_bn_relu_kernel,
        out_shape=jax.ShapeDtypeStruct((n, h, w, c2), out_dtype),
        grid=(n, h, 3),
        in_specs=[
            pl.BlockSpec((None, None, wp2, c), lambda ni, hi, dy: (ni, hi + dy, 0, 0)),
            pl.BlockSpec((9, c, c2), lambda ni, hi, dy: (0, 0, 0)),
            pl.BlockSpec((1, c2), lambda ni, hi, dy: (0, 0)),
        ],
        out_specs=pl.BlockSpec((None, None, w, c2), lambda ni, hi, dy: (ni, hi, 0, 0)),
        scratch_shapes=[pltpu.VMEM((w, c2), jnp.float32)],
        compiler_params=pltpu.CompilerParams(
            dimension_semantics=("parallel", "parallel", "arbitrary"),
            vmem_limit_bytes=_VMEM_LIMIT),
    )(x_pad, w9, bias)


# ----------------------------------------------------------------------------
# Parameters (deterministic, synthetic) + BN folding / channel padding
# ----------------------------------------------------------------------------
def init_bottleneck_params(key, inplanes, planes):
    cout = planes * EXPANSION
    k1, k2, k3, _ = jax.random.split(key, 4)
    params = {
        "w1": 0.1 * jax.random.normal(k1, (inplanes, planes), jnp.float32),      # 1x1
        "w2": 0.1 * jax.random.normal(k2, (3, 3, planes, planes), jnp.float32),  # 3x3 HWIO
        "w3": 0.1 * jax.random.normal(k3, (planes, cout), jnp.float32),          # 1x1
    }

    def bn_params(c, offset):
        gamma = 1.0 + 0.1 * jnp.arange(c, dtype=jnp.float32) / c
        beta = 0.05 * jnp.arange(c, dtype=jnp.float32) - 0.02 * offset
        rmean = 0.01 * jnp.arange(c, dtype=jnp.float32)
        rvar = 1.0 + 0.02 * jnp.arange(c, dtype=jnp.float32)
        return gamma, beta, rmean, rvar

    params["bn1"] = bn_params(planes, 1)
    params["bn2"] = bn_params(planes, 2)
    params["bn3"] = bn_params(cout, 3)
    return params


def _fold_bn(gamma, beta, rmean, rvar):
    scale = gamma / jnp.sqrt(rvar + BN_EPS)
    bias = beta - rmean * scale
    return scale, bias


def prepare_params(params):
    """Fold BN scale into weights, cast to bf16, pad channels to lane multiples."""
    w1, w2, w3 = params["w1"], params["w2"], params["w3"]
    cin, planes = w1.shape
    cout = w3.shape[1]
    cin_p = _round_up(cin, _LANE)
    p_p = _round_up(planes, _LANE)
    co_p = _round_up(cout, _LANE)

    s1, b1 = _fold_bn(*params["bn1"])
    s2, b2 = _fold_bn(*params["bn2"])
    s3, b3 = _fold_bn(*params["bn3"])

    w1f = (w1 * s1[None, :]).astype(jnp.bfloat16)
    w2f = (w2 * s2[None, None, None, :]).astype(jnp.bfloat16)
    w3f = (w3 * s3[None, :]).astype(jnp.bfloat16)

    w1p = jnp.zeros((cin_p, p_p), jnp.bfloat16).at[:cin, :planes].set(w1f)
    w2p = jnp.zeros((3, 3, p_p, p_p), jnp.bfloat16).at[:, :, :planes, :planes].set(w2f)
    w3p = jnp.zeros((p_p, co_p), jnp.bfloat16).at[:planes, :cout].set(w3f)

    b1p = jnp.zeros((1, p_p), jnp.float32).at[0, :planes].set(b1)
    b2p = jnp.zeros((1, p_p), jnp.float32).at[0, :planes].set(b2)
    b3p = jnp.zeros((1, co_p), jnp.float32).at[0, :cout].set(b3)

    return {"w1": w1p, "b1": b1p,
            "w2": w2p.reshape(9, p_p, p_p), "b2": b2p,
            "w3": w3p, "b3": b3p}


# ----------------------------------------------------------------------------
# Bottleneck forward (Pallas)
# ----------------------------------------------------------------------------
def bottleneck_forward(x_nchw, params, stride=1):
    if stride != 1:
        # TODO(synk): stride != 1 requires the optional `downsample` branch.
        raise NotImplementedError("stride != 1 / downsample not implemented")

    n, cin, h, w = x_nchw.shape
    planes = params["w1"].shape[1]
    cout = planes * EXPANSION
    assert cin == cout, "downsample is None => inplanes must equal planes*4"

    prep = prepare_params(params)
    p_p = prep["w1"].shape[1]

    x_nhwc = jnp.transpose(x_nchw, (0, 2, 3, 1)).astype(jnp.float32)  # NHWC
    m = n * h * w
    x2d = x_nhwc.reshape(m, cin)

    # ---- stage 1: 1x1 conv + BN + ReLU  (bf16, channel-padded output) ------
    y1 = fused_matmul_bn_relu(x2d, prep["w1"], prep["b1"], out_dtype=jnp.bfloat16)
    y1 = y1.reshape(n, h, w, p_p)

    # ---- stage 2: 3x3 conv (stride 1, pad 1) + BN + ReLU --------------------
    y1p = jnp.pad(y1, ((0, 0), (1, 1), (1, 1), (0, 0)))
    y2 = conv3x3_bn_relu(y1p, prep["w2"], prep["b2"], out_dtype=jnp.bfloat16)
    y2_2d = y2.reshape(m, p_p)

    # ---- stage 3: 1x1 conv + BN + residual add + ReLU -----------------------
    out = fused_matmul_bn_relu(y2_2d, prep["w3"], prep["b3"], residual=x2d,
                               out_dtype=jnp.float32)
    out = out[:, :cout].reshape(n, h, w, cout)
    return jnp.transpose(out, (0, 3, 1, 2))  # back to NCHW


# ----------------------------------------------------------------------------
# Pure-JAX reference (for correctness check)
# ----------------------------------------------------------------------------
def bottleneck_reference(x_nchw, params, stride=1):
    x = jnp.transpose(x_nchw, (0, 2, 3, 1)).astype(jnp.float32)

    def bn(y, bnp):
        gamma, beta, rmean, rvar = bnp
        return (y - rmean) / jnp.sqrt(rvar + BN_EPS) * gamma + beta

    dn = ("NHWC", "HWIO", "NHWC")
    planes = params["w1"].shape[1]
    cout = planes * EXPANSION

    y = lax.conv_general_dilated(x, params["w1"].reshape(1, 1, -1, planes),
                                 (1, 1), "VALID", dimension_numbers=dn)
    y = jnp.maximum(bn(y, params["bn1"]), 0.0)
    y = lax.conv_general_dilated(y, params["w2"], (stride, stride),
                                 ((1, 1), (1, 1)), dimension_numbers=dn)
    y = jnp.maximum(bn(y, params["bn2"]), 0.0)
    y = lax.conv_general_dilated(y, params["w3"].reshape(1, 1, planes, cout),
                                 (1, 1), "VALID", dimension_numbers=dn)
    y = bn(y, params["bn3"]) + x
    y = jnp.maximum(y, 0.0)
    return jnp.transpose(y, (0, 3, 1, 2))


if __name__ == "__main__":
    key = jax.random.PRNGKey(0)
    k_x, k_p = jax.random.split(key)

    # Small shapes: batch=2, inplanes=16, planes=4 (planes*4 == inplanes),
    # spatial 8x8, stride=1, downsample=None.
    N, inplanes, planes, H, W = 2, 16, 4, 8, 8
    x = jax.random.normal(k_x, (N, inplanes, H, W), jnp.float32)
    params = init_bottleneck_params(k_p, inplanes, planes)

    fwd = jax.jit(bottleneck_forward)
    out = jax.block_until_ready(fwd(x, params))
    ref = jax.block_until_ready(bottleneck_reference(x, params))

    # bf16 matmul operands => looser tolerance than the pure-f32 version.
    if not jnp.allclose(out, ref, atol=2e-2, rtol=2e-2):
        err = float(jnp.max(jnp.abs(out - ref)))
        raise AssertionError(f"Pallas Bottleneck mismatch vs reference (max abs err {err})")

    print("KERNEL_OK")
</pallas_src>

<mosaic_0001>
module attributes {stable_mosaic.version = 11 : i64} {
  func.func @_matmul_bias_relu_kernel(%arg0: i32, %arg1: i32, %arg2: i32, %arg3: memref<128x128xbf16, #tpu.memory_space<vmem>>, %arg4: memref<128x128xbf16, #tpu.memory_space<vmem>>, %arg5: memref<1x128xf32, #tpu.memory_space<vmem>>, %arg6: memref<128x128xbf16, #tpu.memory_space<vmem>>, %arg7: memref<128x128xf32, #tpu.memory_space<vmem>>) attributes {dimension_semantics = [#tpu.dimension_semantics<parallel>, #tpu.dimension_semantics<parallel>, #tpu.dimension_semantics<arbitrary>], iteration_bounds = array<i64: 1, 1, 1>, scalar_prefetch = 0 : i64, scratch_operands = 1 : i64, tpu.core_type = #tpu.core_type<tc>, window_params = [{transform_indices = @transform_0, window_bounds = array<i64: 128, 128>}, {transform_indices = @transform_1, window_bounds = array<i64: 128, 128>}, {transform_indices = @transform_2, window_bounds = array<i64: 1, 128>}, {transform_indices = @transform_3, window_bounds = array<i64: 128, 128>}]} {
    %c0_i32 = arith.constant 0 : i32
    %0 = arith.cmpi eq, %arg2, %c0_i32 : i32
    %1 = arith.extui %0 : i1 to i32
    %c0_i32_0 = arith.constant 0 : i32
    %2 = arith.cmpi ne, %1, %c0_i32_0 : i32
    scf.if %2 {
      %cst_10 = arith.constant 0.000000e+00 : f32
      %12 = vector.broadcast %cst_10 : f32 to vector<128x128xf32>
      %c0_11 = arith.constant 0 : index
      %c0_12 = arith.constant 0 : index
      %13 = vector.load %arg7[%c0_11, %c0_12] : memref<128x128xf32, #tpu.memory_space<vmem>>, vector<128x128xf32>
      tpu.vector_store %arg7[%c0_11, %c0_12], %12 {strides = array<i32>} : memref<128x128xf32, #tpu.memory_space<vmem>>, vector<128x128xf32>,
    } else {
    }
    %c0 = arith.constant 0 : index
    %c0_1 = arith.constant 0 : index
    %3 = vector.load %arg7[%c0, %c0_1] : memref<128x128xf32, #tpu.memory_space<vmem>>, vector<128x128xf32>
    %c0_2 = arith.constant 0 : index
    %c0_3 = arith.constant 0 : index
    %4 = vector.load %arg3[%c0_2, %c0_3] : memref<128x128xbf16, #tpu.memory_space<vmem>>, vector<128x128xbf16>
    %c0_4 = arith.constant 0 : index
    %c0_5 = arith.constant 0 : index
    %5 = vector.load %arg4[%c0_4, %c0_5] : memref<128x128xbf16, #tpu.memory_space<vmem>>, vector<128x128xbf16>
    %cst = arith.constant dense<0.000000e+00> : vector<128x128xf32>
    %6 = tpu.matmul %4, %5, %cst {dimension_numbers = #tpu.dot_dimension_numbers<[1], [0], [0], [1], [0, 0, 1, 1], [], []>} : vector<128x128xbf16>, vector<128x128xbf16>, vector<128x128xf32> -> vector<128x128xf32>
    %7 = arith.addf %3, %6 : vector<128x128xf32>
    %c0_6 = arith.constant 0 : index
    %c0_7 = arith.constant 0 : index
    %8 = vector.load %arg7[%c0_6, %c0_7] : memref<128x128xf32, #tpu.memory_space<vmem>>, vector<128x128xf32>
    tpu.vector_store %arg7[%c0_6, %c0_7], %7 {strides = array<i32>} : memref<128x128xf32, #tpu.memory_space<vmem>>, vector<128x128xf32>,
    %c0_i32_8 = arith.constant 0 : i32
    %9 = arith.cmpi eq, %arg2, %c0_i32_8 : i32
    %10 = arith.extui %9 : i1 to i32
    %c0_i32_9 = arith.constant 0 : i32
    %11 = arith.cmpi ne, %10, %c0_i32_9 : i32
    scf.if %11 {
      %c0_10 = arith.constant 0 : index
      %c0_11 = arith.constant 0 : index
      %12 = vector.load %arg7[%c0_10, %c0_11] : memref<128x128xf32, #tpu.memory_space<vmem>>, vector<128x128xf32>
      %c0_12 = arith.constant 0 : index
      %c0_13 = arith.constant 0 : index
      %13 = vector.load %arg5[%c0_12, %c0_13] : memref<1x128xf32, #tpu.memory_space<vmem>>, vector<1x128xf32>
      %14 = vector.broadcast %13 : vector<1x128xf32> to vector<128x128xf32>
      %15 = arith.addf %12, %14 : vector<128x128xf32>
      %cst_14 = arith.constant 0.000000e+00 : f32
      %16 = vector.broadcast %cst_14 : f32 to vector<128x128xf32>
      %17 = arith.maximumf %15, %16 : vector<128x128xf32>
      %18 = arith.truncf %17 : vector<128x128xf32> to vector<128x128xbf16>
      %c0_15 = arith.constant 0 : index
      %c0_16 = arith.constant 0 : index
      %19 = vector.load %arg6[%c0_15, %c0_16] : memref<128x128xbf16, #tpu.memory_space<vmem>>, vector<128x128xbf16>
      tpu.vector_store %arg6[%c0_15, %c0_16], %18 {strides = array<i32>} : memref<128x128xbf16, #tpu.memory_space<vmem>>, vector<128x128xbf16>,
    } else {
    }
    return
  }
  func.func @transform_0(%arg0: i32, %arg1: i32, %arg2: i32) -> (i32, i32) {
    %c0_i32 = arith.constant 0 : i32
    return %arg0, %arg2 : i32, i32
  }
  func.func @transform_1(%arg0: i32, %arg1: i32, %arg2: i32) -> (i32, i32) {
    %c0_i32 = arith.constant 0 : i32
    return %arg2, %arg1 : i32, i32
  }
  func.func @transform_2(%arg0: i32, %arg1: i32, %arg2: i32) -> (i32, i32) {
    %c0_i32 = arith.constant 0 : i32
    %c0_i32_0 = arith.constant 0 : i32
    return %c0_i32, %arg1 : i32, i32
  }
  func.func @transform_3(%arg0: i32, %arg1: i32, %arg2: i32) -> (i32, i32) {
    %c0_i32 = arith.constant 0 : i32
    return %arg0, %arg1 : i32, i32
  }
}

module attributes {stable_mosaic.version = 11 : i64} {
  func.func @_conv3x3_bn_relu_kernel(%arg0: i32, %arg1: i32, %arg2: i32, %arg3: memref<1x1x10x128xbf16, #tpu.memory_space<vmem>>, %arg4: memref<9x128x128xbf16, #tpu.memory_space<vmem>>, %arg5: memref<1x128xf32, #tpu.memory_space<vmem>>, %arg6: memref<1x1x8x128xbf16, #tpu.memory_space<vmem>>, %arg7: memref<8x128xf32, #tpu.memory_space<vmem>>) attributes {dimension_semantics = [#tpu.dimension_semantics<parallel>, #tpu.dimension_semantics<parallel>, #tpu.dimension_semantics<arbitrary>], iteration_bounds = array<i64: 2, 8, 3>, scalar_prefetch = 0 : i64, scratch_operands = 1 : i64, tpu.core_type = #tpu.core_type<tc>, window_params = [{transform_indices = @transform_0, window_bounds = array<i64: 1, 1, 10, 128>}, {pipeline_mode = #tpu.pipeline_mode<synchronous>, transform_indices = @transform_1, window_bounds = array<i64: 9, 128, 128>}, {pipeline_mode = #tpu.pipeline_mode<synchronous>, transform_indices = @transform_2, window_bounds = array<i64: 1, 128>}, {transform_indices = @transform_3, window_bounds = array<i64: 1, 1, 8, 128>}]} {
    %c0_i32 = arith.constant 0 : i32
    %0 = arith.cmpi eq, %arg2, %c0_i32 : i32
    %1 = arith.extui %0 : i1 to i32
    %c0_i32_0 = arith.constant 0 : i32
    %2 = arith.cmpi ne, %1, %c0_i32_0 : i32
    scf.if %2 {
      %cst_21 = arith.constant 0.000000e+00 : f32
      %34 = vector.broadcast %cst_21 : f32 to vector<8x128xf32>
      %c0_22 = arith.constant 0 : index
      %c0_23 = arith.constant 0 : index
      %35 = vector.load %arg7[%c0_22, %c0_23] : memref<8x128xf32, #tpu.memory_space<vmem>>, vector<8x128xf32>
      tpu.vector_store %arg7[%c0_22, %c0_23], %34 {strides = array<i32>} : memref<8x128xf32, #tpu.memory_space<vmem>>, vector<8x128xf32>,
    } else {
    }
    %c0 = arith.constant 0 : index
    %c0_1 = arith.constant 0 : index
    %c0_2 = arith.constant 0 : index
    %c0_3 = arith.constant 0 : index
    %3 = vector.load %arg3[%c0, %c0_1, %c0_2, %c0_3] : memref<1x1x10x128xbf16, #tpu.memory_space<vmem>>, vector<1x1x10x128xbf16>
    %4 = vector.shape_cast %3 : vector<1x1x10x128xbf16> to vector<10x128xbf16>
    %c0_4 = arith.constant 0 : index
    %c0_5 = arith.constant 0 : index
    %5 = vector.load %arg7[%c0_4, %c0_5] : memref<8x128xf32, #tpu.memory_space<vmem>>, vector<8x128xf32>
    %6 = vector.extract_strided_slice %4 {offsets = [0, 0], sizes = [8, 128], strides = [1, 1]} : vector<10x128xbf16> to vector<8x128xbf16>
    %c3_i32 = arith.constant 3 : i32
    %7 = arith.muli %arg2, %c3_i32 : i32
    %c0_i32_6 = arith.constant 0 : i32
    %8 = arith.addi %7, %c0_i32_6 : i32
    %9 = arith.index_cast %8 : i32 to index
    %c0_7 = arith.constant 0 : index
    %c0_8 = arith.constant 0 : index
    %10 = vector.load %arg4[%9, %c0_7, %c0_8] : memref<9x128x128xbf16, #tpu.memory_space<vmem>>, vector<1x128x128xbf16>
    %11 = vector.shape_cast %10 : vector<1x128x128xbf16> to vector<128x128xbf16>
    %cst = arith.constant dense<0.000000e+00> : vector<8x128xf32>
    %12 = tpu.matmul %6, %11, %cst {dimension_numbers = #tpu.dot_dimension_numbers<[1], [0], [0], [1], [0, 0, 1, 1], [], []>} : vector<8x128xbf16>, vector<128x128xbf16>, vector<8x128xf32> -> vector<8x128xf32>
    %13 = arith.addf %5, %12 : vector<8x128xf32>
    %14 = vector.extract_strided_slice %4 {offsets = [1, 0], sizes = [8, 128], strides = [1, 1]} : vector<10x128xbf16> to vector<8x128xbf16>
    %c3_i32_9 = arith.constant 3 : i32
    %15 = arith.muli %arg2, %c3_i32_9 : i32
    %c1_i32 = arith.constant 1 : i32
    %16 = arith.addi %15, %c1_i32 : i32
    %17 = arith.index_cast %16 : i32 to index
    %c0_10 = arith.constant 0 : index
    %c0_11 = arith.constant 0 : index
    %18 = vector.load %arg4[%17, %c0_10, %c0_11] : memref<9x128x128xbf16, #tpu.memory_space<vmem>>, vector<1x128x128xbf16>
    %19 = vector.shape_cast %18 : vector<1x128x128xbf16> to vector<128x128xbf16>
    %cst_12 = arith.constant dense<0.000000e+00> : vector<8x128xf32>
    %20 = tpu.matmul %14, %19, %cst_12 {dimension_numbers = #tpu.dot_dimension_numbers<[1], [0], [0], [1], [0, 0, 1, 1], [], []>} : vector<8x128xbf16>, vector<128x128xbf16>, vector<8x128xf32> -> vector<8x128xf32>
    %21 = arith.addf %13, %20 : vector<8x128xf32>
    %22 = vector.extract_strided_slice %4 {offsets = [2, 0], sizes = [8, 128], strides = [1, 1]} : vector<10x128xbf16> to vector<8x128xbf16>
    %c3_i32_13 = arith.constant 3 : i32
    %23 = arith.muli %arg2, %c3_i32_13 : i32
    %c2_i32 = arith.constant 2 : i32
    %24 = arith.addi %23, %c2_i32 : i32
    %25 = arith.index_cast %24 : i32 to index
    %c0_14 = arith.constant 0 : index
    %c0_15 = arith.constant 0 : index
    %26 = vector.load %arg4[%25, %c0_14, %c0_15] : memref<9x128x128xbf16, #tpu.memory_space<vmem>>, vector<1x128x128xbf16>
    %27 = vector.shape_cast %26 : vector<1x128x128xbf16> to vector<128x128xbf16>
    %cst_16 = arith.constant dense<0.000000e+00> : vector<8x128xf32>
    %28 = tpu.matmul %22, %27, %cst_16 {dimension_numbers = #tpu.dot_dimension_numbers<[1], [0], [0], [1], [0, 0, 1, 1], [], []>} : vector<8x128xbf16>, vector<128x128xbf16>, vector<8x128xf32> -> vector<8x128xf32>
    %29 = arith.addf %21, %28 : vector<8x128xf32>
    %c0_17 = arith.constant 0 : index
    %c0_18 = arith.constant 0 : index
    %30 = vector.load %arg7[%c0_17, %c0_18] : memref<8x128xf32, #tpu.memory_space<vmem>>, vector<8x128xf32>
    tpu.vector_store %arg7[%c0_17, %c0_18], %29 {strides = array<i32>} : memref<8x128xf32, #tpu.memory_space<vmem>>, vector<8x128xf32>,
    %c2_i32_19 = arith.constant 2 : i32
    %31 = arith.cmpi eq, %arg2, %c2_i32_19 : i32
    %32 = arith.extui %31 : i1 to i32
    %c0_i32_20 = arith.constant 0 : i32
    %33 = arith.cmpi ne, %32, %c0_i32_20 : i32
    scf.if %33 {
      %c0_21 = arith.constant 0 : index
      %c0_22 = arith.constant 0 : index
      %34 = vector.load %arg5[%c0_21, %c0_22] : memref<1x128xf32, #tpu.memory_space<vmem>>, vector<1x128xf32>
      %35 = vector.broadcast %34 : vector<1x128xf32> to vector<8x128xf32>
      %36 = arith.addf %29, %35 : vector<8x128xf32>
      %cst_23 = arith.constant 0.000000e+00 : f32
      %37 = vector.broadcast %cst_23 : f32 to vector<8x128xf32>
      %38 = arith.maximumf %36, %37 : vector<8x128xf32>
      %39 = arith.truncf %38 : vector<8x128xf32> to vector<8x128xbf16>
      %c0_24 = arith.constant 0 : index
      %c0_25 = arith.constant 0 : index
      %c0_26 = arith.constant 0 : index
      %c0_27 = arith.constant 0 : index
      %40 = vector.load %arg6[%c0_24, %c0_25, %c0_26, %c0_27] : memref<1x1x8x128xbf16, #tpu.memory_space<vmem>>, vector<1x1x8x128xbf16>
      %41 = vector.shape_cast %40 : vector<1x1x8x128xbf16> to vector<8x128xbf16>
      %42 = vector.shape_cast %39 : vector<8x128xbf16> to vector<1x1x8x128xbf16>
      tpu.vector_store %arg6[%c0_24, %c0_25, %c0_26, %c0_27], %42 {strides = array<i32>} : memref<1x1x8x128xbf16, #tpu.memory_space<vmem>>, vector<1x1x8x128xbf16>,
    } else {
    }
    return
  }
  func.func @transform_0(%arg0: i32, %arg1: i32, %arg2: i32) -> (i32, i32, i32, i32) {
    %0 = arith.addi %arg1, %arg2 : i32
    %c0_i32 = arith.constant 0 : i32
    %c0_i32_0 = arith.constant 0 : i32
    %c0_i32_1 = arith.constant 0 : i32
    return %arg0, %0, %c0_i32, %c0_i32_0 : i32, i32, i32, i32
  }
  func.func @transform_1(%arg0: i32, %arg1: i32, %arg2: i32) -> (i32, i32, i32) {
    %c0_i32 = arith.constant 0 : i32
    %c0_i32_0 = arith.constant 0 : i32
    %c0_i32_1 = arith.constant 0 : i32
    %c0_i32_2 = arith.constant 0 : i32
    return %c0_i32, %c0_i32_0, %c0_i32_1 : i32, i32, i32
  }
  func.func @transform_2(%arg0: i32, %arg1: i32, %arg2: i32) -> (i32, i32) {
    %c0_i32 = arith.constant 0 : i32
    %c0_i32_0 = arith.constant 0 : i32
    %c0_i32_1 = arith.constant 0 : i32
    return %c0_i32, %c0_i32_0 : i32, i32
  }
  func.func @transform_3(%arg0: i32, %arg1: i32, %arg2: i32) -> (i32, i32, i32, i32) {
    %c0_i32 = arith.constant 0 : i32
    %c0_i32_0 = arith.constant 0 : i32
    %c0_i32_1 = arith.constant 0 : i32
    return %arg0, %arg1, %c0_i32, %c0_i32_0 : i32, i32, i32, i32
  }
}

module attributes {stable_mosaic.version = 11 : i64} {
  func.func @_matmul_bias_res_relu_kernel(%arg0: i32, %arg1: i32, %arg2: i32, %arg3: memref<128x128xbf16, #tpu.memory_space<vmem>>, %arg4: memref<128x128xbf16, #tpu.memory_space<vmem>>, %arg5: memref<1x128xf32, #tpu.memory_space<vmem>>, %arg6: memref<128x128xf32, #tpu.memory_space<vmem>>, %arg7: memref<128x128xf32, #tpu.memory_space<vmem>>, %arg8: memref<128x128xf32, #tpu.memory_space<vmem>>) attributes {dimension_semantics = [#tpu.dimension_semantics<parallel>, #tpu.dimension_semantics<parallel>, #tpu.dimension_semantics<arbitrary>], iteration_bounds = array<i64: 1, 1, 1>, scalar_prefetch = 0 : i64, scratch_operands = 1 : i64, tpu.core_type = #tpu.core_type<tc>, window_params = [{transform_indices = @transform_0, window_bounds = array<i64: 128, 128>}, {transform_indices = @transform_1, window_bounds = array<i64: 128, 128>}, {transform_indices = @transform_2, window_bounds = array<i64: 1, 128>}, {transform_indices = @transform_3, window_bounds = array<i64: 128, 128>}, {transform_indices = @transform_4, window_bounds = array<i64: 128, 128>}]} {
    %c0_i32 = arith.constant 0 : i32
    %0 = arith.cmpi eq, %arg2, %c0_i32 : i32
    %1 = arith.extui %0 : i1 to i32
    %c0_i32_0 = arith.constant 0 : i32
    %2 = arith.cmpi ne, %1, %c0_i32_0 : i32
    scf.if %2 {
      %cst_10 = arith.constant 0.000000e+00 : f32
      %12 = vector.broadcast %cst_10 : f32 to vector<128x128xf32>
      %c0_11 = arith.constant 0 : index
      %c0_12 = arith.constant 0 : index
      %13 = vector.load %arg8[%c0_11, %c0_12] : memref<128x128xf32, #tpu.memory_space<vmem>>, vector<128x128xf32>
      tpu.vector_store %arg8[%c0_11, %c0_12], %12 {strides = array<i32>} : memref<128x128xf32, #tpu.memory_space<vmem>>, vector<128x128xf32>,
    } else {
    }
    %c0 = arith.constant 0 : index
    %c0_1 = arith.constant 0 : index
    %3 = vector.load %arg8[%c0, %c0_1] : memref<128x128xf32, #tpu.memory_space<vmem>>, vector<128x128xf32>
    %c0_2 = arith.constant 0 : index
    %c0_3 = arith.constant 0 : index
    %4 = vector.load %arg3[%c0_2, %c0_3] : memref<128x128xbf16, #tpu.memory_space<vmem>>, vector<128x128xbf16>
    %c0_4 = arith.constant 0 : index
    %c0_5 = arith.constant 0 : index
    %5 = vector.load %arg4[%c0_4, %c0_5] : memref<128x128xbf16, #tpu.memory_space<vmem>>, vector<128x128xbf16>
    %cst = arith.constant dense<0.000000e+00> : vector<128x128xf32>
    %6 = tpu.matmul %4, %5, %cst {dimension_numbers = #tpu.dot_dimension_numbers<[1], [0], [0], [1], [0, 0, 1, 1], [], []>} : vector<128x128xbf16>, vector<128x128xbf16>, vector<128x128xf32> -> vector<128x128xf32>
    %7 = arith.addf %3, %6 : vector<128x128xf32>
    %c0_6 = arith.constant 0 : index
    %c0_7 = arith.constant 0 : index
    %8 = vector.load %arg8[%c0_6, %c0_7] : memref<128x128xf32, #tpu.memory_space<vmem>>, vector<128x128xf32>
    tpu.vector_store %arg8[%c0_6, %c0_7], %7 {strides = array<i32>} : memref<128x128xf32, #tpu.memory_space<vmem>>, vector<128x128xf32>,
    %c0_i32_8 = arith.constant 0 : i32
    %9 = arith.cmpi eq, %arg2, %c0_i32_8 : i32
    %10 = arith.extui %9 : i1 to i32
    %c0_i32_9 = arith.constant 0 : i32
    %11 = arith.cmpi ne, %10, %c0_i32_9 : i32
    scf.if %11 {
      %c0_10 = arith.constant 0 : index
      %c0_11 = arith.constant 0 : index
      %12 = vector.load %arg8[%c0_10, %c0_11] : memref<128x128xf32, #tpu.memory_space<vmem>>, vector<128x128xf32>
      %c0_12 = arith.constant 0 : index
      %c0_13 = arith.constant 0 : index
      %13 = vector.load %arg5[%c0_12, %c0_13] : memref<1x128xf32, #tpu.memory_space<vmem>>, vector<1x128xf32>
      %14 = vector.broadcast %13 : vector<1x128xf32> to vector<128x128xf32>
      %15 = arith.addf %12, %14 : vector<128x128xf32>
      %c0_14 = arith.constant 0 : index
      %c0_15 = arith.constant 0 : index
      %16 = vector.load %arg6[%c0_14, %c0_15] : memref<128x128xf32, #tpu.memory_space<vmem>>, vector<128x128xf32>
      %17 = arith.addf %15, %16 : vector<128x128xf32>
      %cst_16 = arith.constant 0.000000e+00 : f32
      %18 = vector.broadcast %cst_16 : f32 to vector<128x128xf32>
      %19 = arith.maximumf %17, %18 : vector<128x128xf32>
      %c0_17 = arith.constant 0 : index
      %c0_18 = arith.constant 0 : index
      %20 = vector.load %arg7[%c0_17, %c0_18] : memref<128x128xf32, #tpu.memory_space<vmem>>, vector<128x128xf32>
      tpu.vector_store %arg7[%c0_17, %c0_18], %19 {strides = array<i32>} : memref<128x128xf32, #tpu.memory_space<vmem>>, vector<128x128xf32>,
    } else {
    }
    return
  }
  func.func @transform_0(%arg0: i32, %arg1: i32, %arg2: i32) -> (i32, i32) {
    %c0_i32 = arith.constant 0 : i32
    return %arg0, %arg2 : i32, i32
  }
  func.func @transform_1(%arg0: i32, %arg1: i32, %arg2: i32) -> (i32, i32) {
    %c0_i32 = arith.constant 0 : i32
    return %arg2, %arg1 : i32, i32
  }
  func.func @transform_2(%arg0: i32, %arg1: i32, %arg2: i32) -> (i32, i32) {
    %c0_i32 = arith.constant 0 : i32
    %c0_i32_0 = arith.constant 0 : i32
    return %c0_i32, %arg1 : i32, i32
  }
  func.func @transform_3(%arg0: i32, %arg1: i32, %arg2: i32) -> (i32, i32) {
    %c0_i32 = arith.constant 0 : i32
    return %arg0, %arg1 : i32, i32
  }
  func.func @transform_4(%arg0: i32, %arg1: i32, %arg2: i32) -> (i32, i32) {
    %c0_i32 = arith.constant 0 : i32
    return %arg0, %arg1 : i32, i32
  }
}

</mosaic_0001>

<llo_original>
// kernel: bottleneck_forward.3
$region0: #{bottleneck_forward.3}
  #allocation0 [shape = 'u32[]', space=smem, size = 0x4, offset = 0x4, fixed_abs, tag = 'smem constant byte address 0x4 - core index']
  #allocation1 [shape = 'u32[144,128]{1,0:T(1,128)}', space=vmem, size = 0x12000, scoped, tag = 'internal scratch']
  #allocation2 [shape = 'f32[128,128]{1,0:T(8,128)}', space=vmem, size = 0x10000, scoped, tag = 'scratch operand']
  %s0 = inlined_call_operand.vmem [shape: bf16[128,128], index: 0, kind: input, shape index: {}]
  %s1 = inlined_call_operand.vmem [shape: bf16[128,128], index: 1, kind: input, shape index: {}]
  %s2 = inlined_call_operand.vmem [shape: f32[1,128], index: 2, kind: input, shape index: {}]
  %s3 = inlined_call_operand.vmem [shape: bf16[128,128], index: 3, kind: output, shape index: {}]
  %s4 = sld [smem:[#allocation0]]
  $region30: #{bottleneck_forward.3} parent=0
    _
  %s6 = ssub.s32 1, %s4
  %s7 = scalar_select 0, %s6, %s4
  // Predicated region
  $region2: #{bottleneck_forward.3} parent=0 // pred_check
    _
  $region3: #{bottleneck_forward.3} parent=0 // pred_check_branch
    %9 = sbr.rel (0) target = $region5
  $region4: #{bottleneck_forward.3} parent=0 // pred_region
    _
  $region5: #{bottleneck_forward.3} parent=0 // pred_fallthru
    _
  // Predicated region
  $region6: #{bottleneck_forward.3} parent=0 // pred_check
    _
  $region7: #{bottleneck_forward.3} parent=0 // pred_check_branch
    %11 = sbr.rel (0) target = $region9
  $region8: #{bottleneck_forward.3} parent=0 // pred_region
    _
  $region9: #{bottleneck_forward.3} parent=0 // pred_fallthru
    _
  // Predicated region
  $region10: #{bottleneck_forward.3} parent=0 // pred_check
    _
  $region11: #{bottleneck_forward.3} parent=0 // pred_check_branch
    %13 = sbr.rel (0) target = $region13
  $region12: #{bottleneck_forward.3} parent=0 // pred_region
    _
  $region13: #{bottleneck_forward.3} parent=0 // pred_fallthru
    _
  %p15 = scmp.eq.s32.totalorder 0, 0
  // Predicated region
  $region14: #{bottleneck_forward.3} parent=0 // pred_check
    %p16 = pneg %p15
  $region15: #{bottleneck_forward.3} parent=0 // pred_check_branch
    %18 = sbr.rel (%p16) target = $region17
  $region16: #{bottleneck_forward.3} parent=0 // pred_region
    %19 = vst [vmem:[#allocation2] sm:$0xff] 0.0
    %20 = vst [vmem:[#allocation2 + $0x8] sm:$0xff] 0.0
    %21 = vst [vmem:[#allocation2 + $0x10] sm:$0xff] 0.0
    %22 = vst [vmem:[#allocation2 + $0x18] sm:$0xff] 0.0
    %23 = vst [vmem:[#allocation2 + $0x20] sm:$0xff] 0.0
    %24 = vst [vmem:[#allocation2 + $0x28] sm:$0xff] 0.0
    %25 = vst [vmem:[#allocation2 + $0x30] sm:$0xff] 0.0
    %26 = vst [vmem:[#allocation2 + $0x38] sm:$0xff] 0.0
    %27 = vst [vmem:[#allocation2 + $0x40] sm:$0xff] 0.0
    %28 = vst [vmem:[#allocation2 + $0x48] sm:$0xff] 0.0
    %29 = vst [vmem:[#allocation2 + $0x50] sm:$0xff] 0.0
    %30 = vst [vmem:[#allocation2 + $0x58] sm:$0xff] 0.0
    %31 = vst [vmem:[#allocation2 + $0x60] sm:$0xff] 0.0
    %32 = vst [vmem:[#allocation2 + $0x68] sm:$0xff] 0.0
    %33 = vst [vmem:[#allocation2 + $0x70] sm:$0xff] 0.0
    %34 = vst [vmem:[#allocation2 + $0x78] sm:$0xff] 0.0
  $region17: #{bottleneck_forward.3} parent=0 // pred_fallthru
    _
  %v35 = vld [vmem:[#allocation2] sm:$0xff]
  %v36 = vld [vmem:[#allocation2 + $0x8] sm:$0xff]
  %v37 = vld [vmem:[#allocation2 + $0x10] sm:$0xff]
  %v38 = vld [vmem:[#allocation2 + $0x18] sm:$0xff]
  %v39 = vld [vmem:[#allocation2 + $0x20] sm:$0xff]
  %v40 = vld [vmem:[#allocation2 + $0x28] sm:$0xff]
  %v41 = vld [vmem:[#allocation2 + $0x30] sm:$0xff]
  %v42 = vld [vmem:[#allocation2 + $0x38] sm:$0xff]
  %v43 = vld [vmem:[#allocation2 + $0x40] sm:$0xff]
  %v44 = vld [vmem:[#allocation2 + $0x48] sm:$0xff]
  %v45 = vld [vmem:[#allocation2 + $0x50] sm:$0xff]
  %v46 = vld [vmem:[#allocation2 + $0x58] sm:$0xff]
  %v47 = vld [vmem:[#allocation2 + $0x60] sm:$0xff]
  %v48 = vld [vmem:[#allocation2 + $0x68] sm:$0xff]
  %v49 = vld [vmem:[#allocation2 + $0x70] sm:$0xff]
  %v50 = vld [vmem:[#allocation2 + $0x78] sm:$0xff]
  %v51 = vld [vmem:[%s0] sm:$0xf]
  %v52 = vld [vmem:[%s0 + $0x4] sm:$0xf]
  %v53 = vld [vmem:[%s0 + $0x8] sm:$0xf]
  %v54 = vld [vmem:[%s0 + $0xc] sm:$0xf]
  %v55 = vld [vmem:[%s0 + $0x10] sm:$0xf]
  %v56 = vld [vmem:[%s0 + $0x14] sm:$0xf]
  %v57 = vld [vmem:[%s0 + $0x18] sm:$0xf]
  %v58 = vld [vmem:[%s0 + $0x1c] sm:$0xf]
  %v59 = vld [vmem:[%s0 + $0x20] sm:$0xf]
  %v60 = vld [vmem:[%s0 + $0x24] sm:$0xf]
  %v61 = vld [vmem:[%s0 + $0x28] sm:$0xf]
  %v62 = vld [vmem:[%s0 + $0x2c] sm:$0xf]
  %v63 = vld [vmem:[%s0 + $0x30] sm:$0xf]
  %v64 = vld [vmem:[%s0 + $0x34] sm:$0xf]
  %v65 = vld [vmem:[%s0 + $0x38] sm:$0xf]
  %v66 = vld [vmem:[%s0 + $0x3c] sm:$0xf]
  %v67 = vld [vmem:[%s1] sm:$0xf]
  %v68 = vld [vmem:[%s1 + $0x4] sm:$0xf]
  %v69 = vld [vmem:[%s1 + $0x8] sm:$0xf]
  %v70 = vld [vmem:[%s1 + $0xc] sm:$0xf]
  %v71 = vld [vmem:[%s1 + $0x10] sm:$0xf]
  %v72 = vld [vmem:[%s1 + $0x14] sm:$0xf]
  %v73 = vld [vmem:[%s1 + $0x18] sm:$0xf]
  %v74 = vld [vmem:[%s1 + $0x1c] sm:$0xf]
  %v75 = vld [vmem:[%s1 + $0x20] sm:$0xf]
  %v76 = vld [vmem:[%s1 + $0x24] sm:$0xf]
  %v77 = vld [vmem:[%s1 + $0x28] sm:$0xf]
  %v78 = vld [vmem:[%s1 + $0x2c] sm:$0xf]
  %v79 = vld [vmem:[%s1 + $0x30] sm:$0xf]
  %v80 = vld [vmem:[%s1 + $0x34] sm:$0xf]
  %v81 = vld [vmem:[%s1 + $0x38] sm:$0xf]
  %v82 = vld [vmem:[%s1 + $0x3c] sm:$0xf]
  %v99 = vunpack.c.l.b16 %v51
  %v100 = vunpack.c.l.b16 %v52
  %v101 = vunpack.c.l.b16 %v53
  %v102 = vunpack.c.l.b16 %v54
  %v103 = vunpack.c.l.b16 %v55
  %v104 = vunpack.c.l.b16 %v56
  %v105 = vunpack.c.l.b16 %v57
  %v106 = vunpack.c.l.b16 %v58
  %v107 = vunpack.c.l.b16 %v59
  %v108 = vunpack.c.l.b16 %v60
  %v109 = vunpack.c.l.b16 %v61
  %v110 = vunpack.c.l.b16 %v62
  %v111 = vunpack.c.l.b16 %v63
  %v112 = vunpack.c.l.b16 %v64
  %v113 = vunpack.c.l.b16 %v65
  %v114 = vunpack.c.l.b16 %v66
  %v115 = vpack.c.b16 %v100, %v99
  %v116 = vpack.c.b16 %v102, %v101
  %v117 = vpack.c.b16 %v104, %v103
  %v118 = vpack.c.b16 %v106, %v105
  %v119 = vpack.c.b16 %v108, %v107
  %v120 = vpack.c.b16 %v110, %v109
  %v121 = vpack.c.b16 %v112, %v111
  %v122 = vpack.c.b16 %v114, %v113
  %v147 = vunpack.c.l.b16 %v67
  %v148 = vunpack.c.l.b16 %v68
  %v149 = vunpack.c.l.b16 %v69
  %v150 = vunpack.c.l.b16 %v70
  %v151 = vunpack.c.l.b16 %v71
  %v152 = vunpack.c.l.b16 %v72
  %v153 = vunpack.c.l.b16 %v73
  %v154 = vunpack.c.l.b16 %v74
  %v155 = vunpack.c.l.b16 %v75
  %v156 = vunpack.c.l.b16 %v76
  %v157 = vunpack.c.l.b16 %v77
  %v158 = vunpack.c.l.b16 %v78
  %v159 = vunpack.c.l.b16 %v79
  %v160 = vunpack.c.l.b16 %v80
  %v161 = vunpack.c.l.b16 %v81
  %v162 = vunpack.c.l.b16 %v82
  %v163 = vpack.c.b16 %v148, %v147
  %v164 = vpack.c.b16 %v150, %v149
  %v165 = vpack.c.b16 %v152, %v151
  %v166 = vpack.c.b16 %v154, %v153
  %v167 = vpack.c.b16 %v156, %v155
  %v168 = vpack.c.b16 %v158, %v157
  %v169 = vpack.c.b16 %v160, %v159
  %v170 = vpack.c.b16 %v162, %v161
  %179 = vmatprep.subr.bf16.mxu0 0
  %180 = vmatpush1.bf16.msra.mxu0 %v170
  %181 = vmatprep.subr.bf16.mxu0 0
  %182 = vmatpush1.bf16.msra.mxu0 %v169
  %183 = vmatprep.subr.bf16.mxu0 0
  %184 = vmatpush1.bf16.msra.mxu0 %v168
  %185 = vmatprep.subr.bf16.mxu0 0
  %186 = vmatpush1.bf16.msra.mxu0 %v167
  %187 = vmatprep.subr.bf16.mxu0 0
  %188 = vmatpush1.bf16.msra.mxu0 %v166
  %189 = vmatprep.subr.bf16.mxu0 0
  %190 = vmatpush1.bf16.msra.mxu0 %v165
  %191 = vmatprep.subr.bf16.mxu0 0
  %192 = vmatpush1.bf16.msra.mxu0 %v164
  %193 = vmatprep.subr.bf16.mxu0 0
  %194 = vmatpush1.bf16.msra.mxu0 %v163
  %195 = vmatprep.subr.bf16.mxu0 0
  %196 = vmatpush2.bf16.msra.mxu0 0
  %197 = vmatprep.subr.bf16.mxu0 0
  %198 = vmatpush2.bf16.msra.mxu0 0
  %199 = vmatprep.subr.bf16.mxu0 0
  %200 = vmatpush2.bf16.msra.mxu0 0
  %201 = vmatprep.subr.bf16.mxu0 0
  %202 = vmatpush2.bf16.msra.mxu0 0
  %203 = vmatprep.subr.bf16.mxu0 0
  %204 = vmatpush2.bf16.msra.mxu0 0
  %205 = vmatprep.subr.bf16.mxu0 0
  %206 = vmatpush2.bf16.msra.mxu0 0
  %207 = vmatprep.subr.bf16.mxu0 0
  %208 = vmatpush2.bf16.msra.mxu0 0
  %209 = vmatprep.subr.bf16.mxu0 0
  %210 = vmatpush2.bf16.msra.mxu0 0
  %211 = vmatprep.mubr.bf16.mxu0 0
  %212 = vmatmul.mubr.bf16.gmra.mxu0 %v115
  %v213 = vpop.f32.mrf.mxu0
  %v214 = vadd.f32 0.0, %v213
  %v215 = vpop.f32.mrf.mxu0
  %v216 = vpop.f32.mrf.mxu0
  %v217 = vadd.f32 0.0, %v216
  %v218 = vpop.f32.mrf.mxu0
  %219 = vmatprep.mubr.bf16.mxu0 0
  %220 = vmatmul.mubr.bf16.gmra.mxu0 %v116
  %v221 = vpop.f32.mrf.mxu0
  %v222 = vadd.f32 0.0, %v221
  %v223 = vpop.f32.mrf.mxu0
  %v224 = vpop.f32.mrf.mxu0
  %v225 = vadd.f32 0.0, %v224
  %v226 = vpop.f32.mrf.mxu0
  %227 = vmatprep.mubr.bf16.mxu0 0
  %228 = vmatmul.mubr.bf16.gmra.mxu0 %v117
  %v229 = vpop.f32.mrf.mxu0
  %v230 = vadd.f32 0.0, %v229
  %v231 = vpop.f32.mrf.mxu0
  %v232 = vpop.f32.mrf.mxu0
  %v233 = vadd.f32 0.0, %v232
  %v234 = vpop.f32.mrf.mxu0
  %235 = vmatprep.mubr.bf16.mxu0 0
  %236 = vmatmul.mubr.bf16.gmra.mxu0 %v118
  %v237 = vpop.f32.mrf.mxu0
  %v238 = vadd.f32 0.0, %v237
  %v239 = vpop.f32.mrf.mxu0
  %v240 = vpop.f32.mrf.mxu0
  %v241 = vadd.f32 0.0, %v240
  %v242 = vpop.f32.mrf.mxu0
  %243 = vmatprep.mubr.bf16.mxu0 0
  %244 = vmatmul.mubr.bf16.gmra.mxu0 %v119
  %v245 = vpop.f32.mrf.mxu0
  %v246 = vadd.f32 0.0, %v245
  %v247 = vpop.f32.mrf.mxu0
  %v248 = vpop.f32.mrf.mxu0
  %v249 = vadd.f32 0.0, %v248
  %v250 = vpop.f32.mrf.mxu0
  %251 = vmatprep.mubr.bf16.mxu0 0
  %252 = vmatmul.mubr.bf16.gmra.mxu0 %v120
  %v253 = vpop.f32.mrf.mxu0
  %v254 = vadd.f32 0.0, %v253
  %v255 = vpop.f32.mrf.mxu0
  %v256 = vpop.f32.mrf.mxu0
  %v257 = vadd.f32 0.0, %v256
  %v258 = vpop.f32.mrf.mxu0
  %259 = vmatprep.mubr.bf16.mxu0 0
  %260 = vmatmul.mubr.bf16.gmra.mxu0 %v121
  %v261 = vpop.f32.mrf.mxu0
  %v262 = vadd.f32 0.0, %v261
  %v263 = vpop.f32.mrf.mxu0
  %v264 = vpop.f32.mrf.mxu0
  %v265 = vadd.f32 0.0, %v264
  %v266 = vpop.f32.mrf.mxu0
  %267 = vmatprep.mubr.bf16.mxu0 0
  %268 = vmatmul.mubr.bf16.gmra.mxu0 %v122
  %v269 = vpop.f32.mrf.mxu0
  %v270 = vadd.f32 0.0, %v269
  %v271 = vpop.f32.mrf.mxu0
  %v272 = vpop.f32.mrf.mxu0
  %v273 = vadd.f32 0.0, %v272
  %v274 = vpop.f32.mrf.mxu0
  %275 = vdwg.mxu0
  %v276 = vadd.f32 %v35, %v214
  %v277 = vadd.f32 %v36, %v217
  %v278 = vadd.f32 %v37, %v222
  %v279 = vadd.f32 %v38, %v225
  %v280 = vadd.f32 %v39, %v230
  %v281 = vadd.f32 %v40, %v233
  %v282 = vadd.f32 %v41, %v238
  %v283 = vadd.f32 %v42, %v241
  %v284 = vadd.f32 %v43, %v246
  %v285 = vadd.f32 %v44, %v249
  %v286 = vadd.f32 %v45, %v254
  %v287 = vadd.f32 %v46, %v257
  %v288 = vadd.f32 %v47, %v262
  %v289 = vadd.f32 %v48, %v265
  %v290 = vadd.f32 %v49, %v270
  %v291 = vadd.f32 %v50, %v273
  %292 = vst [vmem:[#allocation2] sm:$0xff] %v276
  %293 = vst [vmem:[#allocation2 + $0x8] sm:$0xff] %v277
  %294 = vst [vmem:[#allocation2 + $0x10] sm:$0xff] %v278
  %295 = vst [vmem:[#allocation2 + $0x18] sm:$0xff] %v279
  %296 = vst [vmem:[#allocation2 + $0x20] sm:$0xff] %v280
  %297 = vst [vmem:[#allocation2 + $0x28] sm:$0xff] %v281
  %298 = vst [vmem:[#allocation2 + $0x30] sm:$0xff] %v282
  %299 = vst [vmem:[#allocation2 + $0x38] sm:$0xff] %v283
  %300 = vst [vmem:[#allocation2 + $0x40] sm:$0xff] %v284
  %301 = vst [vmem:[#allocation2 + $0x48] sm:$0xff] %v285
  %302 = vst [vmem:[#allocation2 + $0x50] sm:$0xff] %v286
  %303 = vst [vmem:[#allocation2 + $0x58] sm:$0xff] %v287
  %304 = vst [vmem:[#allocation2 + $0x60] sm:$0xff] %v288
  %305 = vst [vmem:[#allocation2 + $0x68] sm:$0xff] %v289
  %306 = vst [vmem:[#allocation2 + $0x70] sm:$0xff] %v290
  %307 = vst [vmem:[#allocation2 + $0x78] sm:$0xff] %v291
  // Predicated region
  $region18: #{bottleneck_forward.3} parent=0 // pred_check
    %p308 = pneg %p15
  $region19: #{bottleneck_forward.3} parent=0 // pred_check_branch
    %310 = sbr.rel (%p308) target = $region21
  $region20: #{bottleneck_forward.3} parent=0 // pred_region
    %v311 = vld [vmem:[#allocation2] sm:$0xff]
    %v312 = vld [vmem:[#allocation2 + $0x8] sm:$0xff]
    %v313 = vld [vmem:[#allocation2 + $0x10] sm:$0xff]
    %v314 = vld [vmem:[#allocation2 + $0x18] sm:$0xff]
    %v315 = vld [vmem:[#allocation2 + $0x20] sm:$0xff]
    %v316 = vld [vmem:[#allocation2 + $0x28] sm:$0xff]
    %v317 = vld [vmem:[#allocation2 + $0x30] sm:$0xff]
    %v318 = vld [vmem:[#allocation2 + $0x38] sm:$0xff]
    %v319 = vld [vmem:[#allocation2 + $0x40] sm:$0xff]
    %v320 = vld [vmem:[#allocation2 + $0x48] sm:$0xff]
    %v321 = vld [vmem:[#allocation2 + $0x50] sm:$0xff]
    %v322 = vld [vmem:[#allocation2 + $0x58] sm:$0xff]
    %v323 = vld [vmem:[#allocation2 + $0x60] sm:$0xff]
    %v324 = vld [vmem:[#allocation2 + $0x68] sm:$0xff]
    %v325 = vld [vmem:[#allocation2 + $0x70] sm:$0xff]
    %v326 = vld [vmem:[#allocation2 + $0x78] sm:$0xff]
    %v327 = vld [vmem:[%s2] sm:$0x1]
    %v329 = vlaneseq
    %v330 = vshrl.u32 %v329, 7
    %v331 = vsub.s32 0, %v330
    %v332 = vrot.slane %v327, %v331
    %v334 = vadd.f32 %v311, %v332
    %v335 = vadd.f32 %v312, %v332
    %v336 = vadd.f32 %v313, %v332
    %v337 = vadd.f32 %v314, %v332
    %v338 = vadd.f32 %v315, %v332
    %v339 = vadd.f32 %v316, %v332
    %v340 = vadd.f32 %v317, %v332
    %v341 = vadd.f32 %v318, %v332
    %v342 = vadd.f32 %v319, %v332
    %v343 = vadd.f32 %v320, %v332
    %v344 = vadd.f32 %v321, %v332
    %v345 = vadd.f32 %v322, %v332
    %v346 = vadd.f32 %v323, %v332
    %v347 = vadd.f32 %v324, %v332
    %v348 = vadd.f32 %v325, %v332
    %v349 = vadd.f32 %v326, %v332
    %v350 = vmax.f32 %v334, 0.0
    %v351 = vmax.f32 %v335, 0.0
    %v352 = vmax.f32 %v336, 0.0
    %v353 = vmax.f32 %v337, 0.0
    %v354 = vmax.f32 %v338, 0.0
    %v355 = vmax.f32 %v339, 0.0
    %v356 = vmax.f32 %v340, 0.0
    %v357 = vmax.f32 %v341, 0.0
    %v358 = vmax.f32 %v342, 0.0
    %v359 = vmax.f32 %v343, 0.0
    %v360 = vmax.f32 %v344, 0.0
    %v361 = vmax.f32 %v345, 0.0
    %v362 = vmax.f32 %v346, 0.0
    %v363 = vmax.f32 %v347, 0.0
    %v364 = vmax.f32 %v348, 0.0
    %v365 = vmax.f32 %v349, 0.0
    %v366 = vpack.c.bf16 %v351, %v350
    %v367 = vpack.c.bf16 %v353, %v352
    %v368 = vpack.c.bf16 %v355, %v354
    %v369 = vpack.c.bf16 %v357, %v356
    %v370 = vpack.c.bf16 %v359, %v358
    %v371 = vpack.c.bf16 %v361, %v360
    %v372 = vpack.c.bf16 %v363, %v362
    %v373 = vpack.c.bf16 %v365, %v364
    %v382 = vunpack.c.l.b16 %v366
    %v383 = vunpack.c.h.b16 %v366
    %v384 = vunpack.c.l.b16 %v367
    %v385 = vunpack.c.h.b16 %v367
    %v386 = vunpack.c.l.b16 %v368
    %v387 = vunpack.c.h.b16 %v368
    %v388 = vunpack.c.l.b16 %v369
    %v389 = vunpack.c.h.b16 %v369
    %v390 = vunpack.c.l.b16 %v370
    %v391 = vunpack.c.h.b16 %v370
    %v392 = vunpack.c.l.b16 %v371
    %v393 = vunpack.c.h.b16 %v371
    %v394 = vunpack.c.l.b16 %v372
    %v395 = vunpack.c.h.b16 %v372
    %v396 = vunpack.c.l.b16 %v373
    %v397 = vunpack.c.h.b16 %v373
    %v398 = vpack.c.b16 %v382, %v382
    %v399 = vpack.c.b16 %v383, %v383
    %v400 = vpack.c.b16 %v384, %v384
    %v401 = vpack.c.b16 %v385, %v385
    %v402 = vpack.c.b16 %v386, %v386
    %v403 = vpack.c.b16 %v387, %v387
    %v404 = vpack.c.b16 %v388, %v388
    %v405 = vpack.c.b16 %v389, %v389
    %v406 = vpack.c.b16 %v390, %v390
    %v407 = vpack.c.b16 %v391, %v391
    %v408 = vpack.c.b16 %v392, %v392
    %v409 = vpack.c.b16 %v393, %v393
    %v410 = vpack.c.b16 %v394, %v394
    %v411 = vpack.c.b16 %v395, %v395
    %v412 = vpack.c.b16 %v396, %v396
    %v413 = vpack.c.b16 %v397, %v397
    %430 = vst [vmem:[%s3] sm:$0xf] %v398
    %431 = vst [vmem:[%s3 + $0x4] sm:$0xf] %v399
    %432 = vst [vmem:[%s3 + $0x8] sm:$0xf] %v400
    %433 = vst [vmem:[%s3 + $0xc] sm:$0xf] %v401
    %434 = vst [vmem:[%s3 + $0x10] sm:$0xf] %v402
    %435 = vst [vmem:[%s3 + $0x14] sm:$0xf] %v403
    %436 = vst [vmem:[%s3 + $0x18] sm:$0xf] %v404
    %437 = vst [vmem:[%s3 + $0x1c] sm:$0xf] %v405
    %438 = vst [vmem:[%s3 + $0x20] sm:$0xf] %v406
    %439 = vst [vmem:[%s3 + $0x24] sm:$0xf] %v407
    %440 = vst [vmem:[%s3 + $0x28] sm:$0xf] %v408
    %441 = vst [vmem:[%s3 + $0x2c] sm:$0xf] %v409
    %442 = vst [vmem:[%s3 + $0x30] sm:$0xf] %v410
    %443 = vst [vmem:[%s3 + $0x34] sm:$0xf] %v411
    %444 = vst [vmem:[%s3 + $0x38] sm:$0xf] %v412
    %445 = vst [vmem:[%s3 + $0x3c] sm:$0xf] %v413
  $region21: #{bottleneck_forward.3} parent=0 // pred_fallthru
    _
  // Predicated region
  $region22: #{bottleneck_forward.3} parent=0 // pred_check
    _
  $region23: #{bottleneck_forward.3} parent=0 // pred_check_branch
    %447 = sbr.rel (0) target = $region25
  $region24: #{bottleneck_forward.3} parent=0 // pred_region
    _
  $region25: #{bottleneck_forward.3} parent=0 // pred_fallthru
    _
  // Predicated region
  $region26: #{bottleneck_forward.3} parent=0 // pred_check
    _
  $region27: #{bottleneck_forward.3} parent=0 // pred_check_branch
    %449 = sbr.rel (0) target = $region29
  $region28: #{bottleneck_forward.3} parent=0 // pred_region
    _
  $region29: #{bottleneck_forward.3} parent=0 // pred_fallthru
    _

// kernel: bottleneck_forward.4
$region0: #{bottleneck_forward.4}
  #allocation0 [shape = 'u32[]', space=smem, size = 0x4, offset = 0x4, fixed_abs, tag = 'smem constant byte address 0x4 - core index']
  #allocation1 [shape = 'u32[144,128]{1,0:T(1,128)}', space=vmem, size = 0x12000, scoped, tag = 'internal scratch']
  #allocation2 [shape = 'f32[8,128]{1,0:T(8,128)}', space=vmem, size = 0x1000, scoped, tag = 'scratch operand']
  %s0 = inlined_call_operand.vmem [shape: bf16[2,10,10,128], index: 0, kind: input, shape index: {}]
  %s1 = inlined_call_operand.vmem [shape: bf16[9,128,128], index: 1, kind: input, shape index: {}]
  %s2 = inlined_call_operand.vmem [shape: f32[1,128], index: 2, kind: input, shape index: {}]
  %s3 = inlined_call_operand.vmem [shape: bf16[2,8,8,128], index: 3, kind: output, shape index: {}]
  %s4 = sld [smem:[#allocation0]]
  $region53: #{bottleneck_forward.4} parent=0
    _
  %s6 = ssub.s32 1, %s4
  %s7 = scalar_select 0, %s6, %s4
  loop: start=0, step=1, limit=50
  $region2: #{bottleneck_forward.4} parent=0 // loop_pre_header
    _
  $region3: #{bottleneck_forward.4} parent=0 // loop_header
    %s9 = sphi 0, %s13
    %p10 = scmp.ge.s32.totalorder %s9, 50
    %s16 = sphi 0, %s35
    %s17 = sphi 0, %s31
    %s18 = sphi 0, %s27
    %s19 = sphi 0, %s16
    %s20 = sphi 0, %s17
    %s21 = sphi 0, %s18
    %s22 = sphi 0, %s19
    %s23 = sphi 0, %s20
    %s24 = sphi 0, %s21
    %s42 = sphi 0, %s44
    %s45 = sphi 0, %s42
    %s46 = sphi 0, %s45
    %s62 = sphi 0, %s46
    %s66 = sphi 0, %s66
    %s68 = sphi 0, %s66
    %s69 = sphi 0, %s68
    %s83 = sphi 0, %s69
    %s87 = sphi 0, %s87
    %s89 = sphi 0, %s87
    %s90 = sphi 0, %s89
    %s104 = sphi 0, %s90
    %s112 = sphi 0, %s114
    %s115 = sphi 0, %s112
    %s116 = sphi 0, %s115
    %s132 = sphi 0, %s116
  $region4: #{bottleneck_forward.4} parent=0 // loop_header_branch
    %12 = sbr.rel (%p10) target = $region8
  $region5: #{bottleneck_forward.4} parent=0 // loop_body
    %s14 = ssub.s32 %s9, 1
    %s15 = ssub.s32 %s9, 2
    %s25 = sadd.s32 1, %s18
    %p26 = scmp.ge.s32.totalorder %s25, 3
    %s27 = scalar_select %p26, 0, %s25
    %s28 = sadd.s32 1, %s17
    %s29 = scalar_select %p26, %s28, %s17
    %p30 = scmp.ge.s32.totalorder %s29, 8
    %s31 = scalar_select %p30, 0, %s29
    %s32 = sadd.s32 1, %s16
    %s33 = scalar_select %p30, %s32, %s16
    %p34 = scmp.ge.s32.totalorder %s33, 2
    %s35 = scalar_select %p34, 0, %s33
    %s36 = sadd.s32 %s17, %s18
    %s37 = sadd.s32 %s31, %s27
    %s38 = ssub.s32 %s16, %s35
    %s39 = ssub.s32 %s36, %s37
    %s40 = sor.u32 %s38, %s39
    %p41 = scmp.eq.s32.totalorder %s40, 0
    %s43 = sadd.s32 %s42, 1
    %s44 = scalar_select %p41, %s42, %s43
    %p47 = pneg %p41
    %p48 = scmp.eq.s32.totalorder %s9, 47
    %p49 = por %p47, %p48
    %p50 = scmp.ne.s32.totalorder %s42, %s45
    %p51 = scmp.eq.s32.totalorder %s9, 0
    %p52 = por %p50, %p51
    %p53 = scmp.ne.s32.totalorder %s42, %s45
    %p54 = scmp.eq.s32.totalorder %s14, 47
    %p55 = por %p53, %p54
    %p56 = scmp.ne.s32.totalorder %s45, %s46
    %p57 = scmp.eq.s32.totalorder %s14, 0
    %p58 = por %p56, %p57
    %p59 = scmp.ne.s32.totalorder %s45, %s46
    %p60 = scmp.eq.s32.totalorder %s15, 47
    %p61 = por %p59, %p60
    %p63 = scmp.ne.s32.totalorder %s46, %s62
    %p64 = scmp.eq.s32.totalorder %s15, 0
    %p65 = por %p63, %p64
    %s67 = sadd.s32 %s66, 1
    %p70 = scmp.eq.s32.totalorder %s9, 47
    %p71 = scmp.ne.s32.totalorder %s66, %s68
    %p72 = scmp.eq.s32.totalorder %s9, 0
    %p73 = por %p71, %p72
    %p74 = scmp.ne.s32.totalorder %s66, %s68
    %p75 = scmp.eq.s32.totalorder %s14, 47
    %p76 = por %p74, %p75
    %p77 = scmp.ne.s32.totalorder %s68, %s69
    %p78 = scmp.eq.s32.totalorder %s14, 0
    %p79 = por %p77, %p78
    %p80 = scmp.ne.s32.totalorder %s68, %s69
    %p81 = scmp.eq.s32.totalorder %s15, 47
    %p82 = por %p80, %p81
    %p84 = scmp.ne.s32.totalorder %s69, %s83
    %p85 = scmp.eq.s32.totalorder %s15, 0
    %p86 = por %p84, %p85
    %s88 = sadd.s32 %s87, 1
    %p91 = scmp.eq.s32.totalorder %s9, 47
    %p92 = scmp.ne.s32.totalorder %s87, %s89
    %p93 = scmp.eq.s32.totalorder %s9, 0
    %p94 = por %p92, %p93
    %p95 = scmp.ne.s32.totalorder %s87, %s89
    %p96 = scmp.eq.s32.totalorder %s14, 47
    %p97 = por %p95, %p96
    %p98 = scmp.ne.s32.totalorder %s89, %s90
    %p99 = scmp.eq.s32.totalorder %s14, 0
    %p100 = por %p98, %p99
    %p101 = scmp.ne.s32.totalorder %s89, %s90
    %p102 = scmp.eq.s32.totalorder %s15, 47
    %p103 = por %p101, %p102
    %p105 = scmp.ne.s32.totalorder %s90, %s104
    %p106 = scmp.eq.s32.totalorder %s15, 0
    %p107 = por %p105, %p106
    %s108 = ssub.s32 %s16, %s35
    %s109 = ssub.s32 %s17, %s31
    %s110 = sor.u32 %s108, %s109
    %p111 = scmp.eq.s32.totalorder %s110, 0
    %s113 = sadd.s32 %s112, 1
    %s114 = scalar_select %p111, %s112, %s113
    %p117 = pneg %p111
    %p118 = scmp.eq.s32.totalorder %s9, 47
    %p119 = por %p117, %p118
    %p120 = scmp.ne.s32.totalorder %s112, %s115
    %p121 = scmp.eq.s32.totalorder %s9, 0
    %p122 = por %p120, %p121
    %p123 = scmp.ne.s32.totalorder %s112, %s115
    %p124 = scmp.eq.s32.totalorder %s14, 47
    %p125 = por %p123, %p124
    %p126 = scmp.ne.s32.totalorder %s115, %s116
    %p127 = scmp.eq.s32.totalorder %s14, 0
    %p128 = por %p126, %p127
    %p129 = scmp.ne.s32.totalorder %s115, %s116
    %p130 = scmp.eq.s32.totalorder %s15, 47
    %p131 = por %p129, %p130
    %p133 = scmp.ne.s32.totalorder %s116, %s132
    %p134 = scmp.eq.s32.totalorder %s15, 0
    %p135 = por %p133, %p134
    %p136 = scmp.le.s32.totalorder 1, %s9
    %p137 = scmp.lt.s32.totalorder %s9, 49
    %p138 = pnand %p136, %p137
    %p139 = pneg %p138
    // Predicated region
    $region9: #{bottleneck_forward.4} parent=5 // pred_check
      _
    $region10: #{bottleneck_forward.4} parent=5 // pred_check_branch
      %141 = sbr.rel (%p138) target = $region12
    $region11: #{bottleneck_forward.4} parent=5 // pred_region
      %s142 = ssub.s32 %s9, 1
      // Predicated region
      $region13: #{bottleneck_forward.4} parent=11 // pred_check
        %p143 = pneg %p79
      $region14: #{bottleneck_forward.4} parent=11 // pred_check_branch
        %145 = sbr.rel (%p143) target = $region16
      $region15: #{bottleneck_forward.4} parent=11 // pred_region
        _
      $region16: #{bottleneck_forward.4} parent=11 // pred_fallthru
        _
      // Predicated region
      $region17: #{bottleneck_forward.4} parent=11 // pred_check
        %p146 = pneg %p100
      $region18: #{bottleneck_forward.4} parent=11 // pred_check_branch
        %148 = sbr.rel (%p146) target = $region20
      $region19: #{bottleneck_forward.4} parent=11 // pred_region
        _
      $region20: #{bottleneck_forward.4} parent=11 // pred_fallthru
        _
    $region12: #{bottleneck_forward.4} parent=5 // pred_fallthru
      _
    %p149 = scmp.lt.s32.totalorder %s9, 48
    // Predicated region
    $region21: #{bottleneck_forward.4} parent=5 // pred_check
      %p150 = pneg %p149
    $region22: #{bottleneck_forward.4} parent=5 // pred_check_branch
      %152 = sbr.rel (%p150) target = $region24
    $region23: #{bottleneck_forward.4} parent=5 // pred_region
      // Predicated region
      $region25: #{bottleneck_forward.4} parent=23 // pred_check
        %p153 = pneg %p52
      $region26: #{bottleneck_forward.4} parent=23 // pred_check_branch
        %155 = sbr.rel (%p153) target = $region28
      $region27: #{bottleneck_forward.4} parent=23 // pred_region
        %s156 = sadd.s32 %s17, %s18
        %p157 = scmp.lt.s32.totalorder %s16, 1
        %s158 = scalar_select %p157, %s16, 1
        %p159 = scmp.lt.s32.totalorder %s156, 9
        %s160 = scalar_select %p159, %s156, 9
        %s161 = smul.addr %s160, 2
        %s162 = smul.addr %s158, 20
        %s163 = sadd.s32 %s161, %s162
        %s164 = smul.addr %s163, 4
        %s165 = scalar_lea.vmem %s0, %s164
        %s166 = sadd.s32 %s17, %s18
      $region28: #{bottleneck_forward.4} parent=23 // pred_fallthru
        _
    $region24: #{bottleneck_forward.4} parent=5 // pred_fallthru
      _
    %p167 = scmp.le.s32.totalorder 1, %s9
    %p168 = scmp.lt.s32.totalorder %s9, 49
    %p169 = pnand %p167, %p168
    %p170 = pneg %p169
    // Predicated region
    $region29: #{bottleneck_forward.4} parent=5 // pred_check
      _
    $region30: #{bottleneck_forward.4} parent=5 // pred_check_branch
      %172 = sbr.rel (%p169) target = $region32
    $region31: #{bottleneck_forward.4} parent=5 // pred_region
      %s173 = ssub.s32 %s9, 1
      %s174 = sadd.s32 %s20, %s21
      %p175 = scmp.lt.s32.totalorder %s19, 1
      %s176 = scalar_select %p175, %s19, 1
      %p177 = scmp.lt.s32.totalorder %s174, 9
      %s178 = scalar_select %p177, %s174, 9
      %s179 = smul.addr %s178, 2
      %s180 = smul.addr %s176, 20
      %s181 = sadd.s32 %s179, %s180
      %s182 = smul.addr %s181, 4
      %s183 = scalar_lea.vmem %s0, %s182
      %p184 = pneg %p58
      %p185 = pneg %p55
      %p186 = pneg %p79
      %p187 = pneg %p76
      %p188 = pneg %p100
      %p189 = pneg %p97
      %p190 = pneg %p128
      %p191 = pneg %p125
      %p192 = scmp.lt.s32.totalorder %s19, 1
      %s193 = scalar_select %p192, %s19, 1
      %p194 = scmp.lt.s32.totalorder %s20, 7
      %s195 = scalar_select %p194, %s20, 7
      %s196 = smul.addr %s193, 8
      %s197 = sadd.s32 %s195, %s196
      %s198 = smul.addr %s197, 4
      %s199 = scalar_lea.vmem %s3, %s198
      %s200 = sadd.s32 %s20, %s21
      %p201 = scmp.lt.s32.totalorder %s19, 1
      %s202 = scalar_select %p201, %s19, 1
      %p203 = scmp.lt.s32.totalorder %s200, 9
      %s204 = scalar_select %p203, %s200, 9
      %s205 = smul.addr %s204, 2
      %s206 = smul.addr %s202, 20
      %s207 = sadd.s32 %s205, %s206
      %s208 = smul.addr %s207, 4
      %s209 = scalar_lea.vmem %s0, %s208
      %s210 = sadd.s32 %s20, %s21
      %p211 = scmp.lt.s32.totalorder %s19, 1
      %s212 = scalar_select %p211, %s19, 1
      %p213 = scmp.lt.s32.totalorder %s20, 7
      %s214 = scalar_select %p213, %s20, 7
      %s215 = smul.addr %s212, 8
      %s216 = sadd.s32 %s214, %s215
      %s217 = smul.addr %s216, 4
      %s218 = scalar_lea.vmem %s3, %s217
      %p220 = scmp.eq.s32.totalorder %s21, 0
      // Predicated region
      $region33: #{bottleneck_forward.4} parent=31 // pred_check
        %p221 = pneg %p220
      $region34: #{bottleneck_forward.4} parent=31 // pred_check_branch
        %223 = sbr.rel (%p221) target = $region36
      $region35: #{bottleneck_forward.4} parent=31 // pred_region
        %224 = vst [vmem:[#allocation2] sm:$0xff] 0.0
      $region36: #{bottleneck_forward.4} parent=31 // pred_fallthru
        _
      %v225 = vld [vmem:[%s209] sm:$0xf]
      %v226 = vld [vmem:[%s209 + $0x4] sm:$0x1]
      %v227 = vld [vmem:[#allocation2] sm:$0xff]
      %s228 = smul.u32 %s21, 3
      %s229 = smul.u32 %s228, 16
      %s230 = smul.addr %s229, 4
      %s231 = scalar_lea.vmem %s1, %s230
      %v232 = vld [vmem:[%s231] sm:$0xf]
      %v233 = vld [vmem:[%s231 + $0x4] sm:$0xf]
      %v234 = vld [vmem:[%s231 + $0x8] sm:$0xf]
      %v235 = vld [vmem:[%s231 + $0xc] sm:$0xf]
      %v236 = vld [vmem:[%s231 + $0x10] sm:$0xf]
      %v237 = vld [vmem:[%s231 + $0x14] sm:$0xf]
      %v238 = vld [vmem:[%s231 + $0x18] sm:$0xf]
      %v239 = vld [vmem:[%s231 + $0x1c] sm:$0xf]
      %v240 = vld [vmem:[%s231 + $0x20] sm:$0xf]
      %v241 = vld [vmem:[%s231 + $0x24] sm:$0xf]
      %v242 = vld [vmem:[%s231 + $0x28] sm:$0xf]
      %v243 = vld [vmem:[%s231 + $0x2c] sm:$0xf]
      %v244 = vld [vmem:[%s231 + $0x30] sm:$0xf]
      %v245 = vld [vmem:[%s231 + $0x34] sm:$0xf]
      %v246 = vld [vmem:[%s231 + $0x38] sm:$0xf]
      %v247 = vld [vmem:[%s231 + $0x3c] sm:$0xf]
      %v264 = vunpack.c.l.b16 %v232
      %v265 = vunpack.c.l.b16 %v233
      %v266 = vunpack.c.l.b16 %v234
      %v267 = vunpack.c.l.b16 %v235
      %v268 = vunpack.c.l.b16 %v236
      %v269 = vunpack.c.l.b16 %v237
      %v270 = vunpack.c.l.b16 %v238
      %v271 = vunpack.c.l.b16 %v239
      %v272 = vunpack.c.l.b16 %v240
      %v273 = vunpack.c.l.b16 %v241
      %v274 = vunpack.c.l.b16 %v242
      %v275 = vunpack.c.l.b16 %v243
      %v276 = vunpack.c.l.b16 %v244
      %v277 = vunpack.c.l.b16 %v245
      %v278 = vunpack.c.l.b16 %v246
      %v279 = vunpack.c.l.b16 %v247
      %v280 = vpack.c.b16 %v265, %v264
      %v281 = vpack.c.b16 %v267, %v266
      %v282 = vpack.c.b16 %v269, %v268
      %v283 = vpack.c.b16 %v271, %v270
      %v284 = vpack.c.b16 %v273, %v272
      %v285 = vpack.c.b16 %v275, %v274
      %v286 = vpack.c.b16 %v277, %v276
      %v287 = vpack.c.b16 %v279, %v278
      %296 = vmatprep.subr.bf16.mxu0 0
      %297 = vmatpush1.bf16.msra.mxu0 %v287
      %298 = vmatprep.subr.bf16.mxu0 0
      %299 = vmatpush1.bf16.msra.mxu0 %v286
      %300 = vmatprep.subr.bf16.mxu0 0
      %301 = vmatpush1.bf16.msra.mxu0 %v285
      %302 = vmatprep.subr.bf16.mxu0 0
      %303 = vmatpush1.bf16.msra.mxu0 %v284
      %304 = vmatprep.subr.bf16.mxu0 0
      %305 = vmatpush1.bf16.msra.mxu0 %v283
      %306 = vmatprep.subr.bf16.mxu0 0
      %307 = vmatpush1.bf16.msra.mxu0 %v282
      %308 = vmatprep.subr.bf16.mxu0 0
      %309 = vmatpush1.bf16.msra.mxu0 %v281
      %310 = vmatprep.subr.bf16.mxu0 0
      %311 = vmatpush1.bf16.msra.mxu0 %v280
      %312 = vmatprep.subr.bf16.mxu0 0
      %313 = vmatpush2.bf16.msra.mxu0 0
      %314 = vmatprep.subr.bf16.mxu0 0
      %315 = vmatpush2.bf16.msra.mxu0 0
      %316 = vmatprep.subr.bf16.mxu0 0
      %317 = vmatpush2.bf16.msra.mxu0 0
      %318 = vmatprep.subr.bf16.mxu0 0
      %319 = vmatpush2.bf16.msra.mxu0 0
      %320 = vmatprep.subr.bf16.mxu0 0
      %321 = vmatpush2.bf16.msra.mxu0 0
      %322 = vmatprep.subr.bf16.mxu0 0
      %323 = vmatpush2.bf16.msra.mxu0 0
      %324 = vmatprep.subr.bf16.mxu0 0
      %325 = vmatpush2.bf16.msra.mxu0 0
      %326 = vmatprep.subr.bf16.mxu0 0
      %327 = vmatpush2.bf16.msra.mxu0 0
      %328 = vmatprep.mubr.bf16.mxu0 0
      %329 = vmatmul.mubr.bf16.gmra.mxu0 %v225
      %v330 = vpop.f32.mrf.mxu0
      %v331 = vadd.f32 0.0, %v330
      %v332 = vpop.f32.mrf.mxu0
      %v333 = vpop.f32.mrf.mxu0
      %v334 = vpop.f32.mrf.mxu0
      %335 = vdwg.mxu0
      %v336 = vadd.f32 %v227, %v331
      %s337 = sadd.s32 %s228, 1
      %s338 = smul.u32 %s337, 16
      %s339 = smul.addr %s338, 4
      %s340 = scalar_lea.vmem %s1, %s339
      %v341 = vld [vmem:[%s340] sm:$0xf]
      %v342 = vld [vmem:[%s340 + $0x4] sm:$0xf]
      %v343 = vld [vmem:[%s340 + $0x8] sm:$0xf]
      %v344 = vld [vmem:[%s340 + $0xc] sm:$0xf]
      %v345 = vld [vmem:[%s340 + $0x10] sm:$0xf]
      %v346 = vld [vmem:[%s340 + $0x14] sm:$0xf]
      %v347 = vld [vmem:[%s340 + $0x18] sm:$0xf]
      %v348 = vld [vmem:[%s340 + $0x1c] sm:$0xf]
      %v349 = vld [vmem:[%s340 + $0x20] sm:$0xf]
      %v350 = vld [vmem:[%s340 + $0x24] sm:$0xf]
      %v351 = vld [vmem:[%s340 + $0x28] sm:$0xf]
      %v352 = vld [vmem:[%s340 + $0x2c] sm:$0xf]
      %v353 = vld [vmem:[%s340 + $0x30] sm:$0xf]
      %v354 = vld [vmem:[%s340 + $0x34] sm:$0xf]
      %v355 = vld [vmem:[%s340 + $0x38] sm:$0xf]
      %v356 = vld [vmem:[%s340 + $0x3c] sm:$0xf]
      %v359 = vunpack.c.l.b16 %v225
      %v360 = vunpack.c.l.b16 %v226
      %v361 = vpack.c.b16 %v360, %v359
      %v363 = vshrl.u32 %v361, 16
      %v365 = vshll.u32 %v361, 16
      %v367 = vrot.slane %v365, 1
      %v368 = vor.u32 %v363, %v367
      %v386 = vunpack.c.l.b16 %v341
      %v387 = vunpack.c.l.b16 %v342
      %v388 = vunpack.c.l.b16 %v343
      %v389 = vunpack.c.l.b16 %v344
      %v390 = vunpack.c.l.b16 %v345
      %v391 = vunpack.c.l.b16 %v346
      %v392 = vunpack.c.l.b16 %v347
      %v393 = vunpack.c.l.b16 %v348
      %v394 = vunpack.c.l.b16 %v349
      %v395 = vunpack.c.l.b16 %v350
      %v396 = vunpack.c.l.b16 %v351
      %v397 = vunpack.c.l.b16 %v352
      %v398 = vunpack.c.l.b16 %v353
      %v399 = vunpack.c.l.b16 %v354
      %v400 = vunpack.c.l.b16 %v355
      %v401 = vunpack.c.l.b16 %v356
      %v402 = vpack.c.b16 %v387, %v386
      %v403 = vpack.c.b16 %v389, %v388
      %v404 = vpack.c.b16 %v391, %v390
      %v405 = vpack.c.b16 %v393, %v392
      %v406 = vpack.c.b16 %v395, %v394
      %v407 = vpack.c.b16 %v397, %v396
      %v408 = vpack.c.b16 %v399, %v398
      %v409 = vpack.c.b16 %v401, %v400
      %418 = vmatprep.subr.bf16.mxu0 0
      %419 = vmatpush1.bf16.msra.mxu0 %v409
      %420 = vmatprep.subr.bf16.mxu0 0
      %421 = vmatpush1.bf16.msra.mxu0 %v408
      %422 = vmatprep.subr.bf16.mxu0 0
      %423 = vmatpush1.bf16.msra.mxu0 %v407
      %424 = vmatprep.subr.bf16.mxu0 0
      %425 = vmatpush1.bf16.msra.mxu0 %v406
      %426 = vmatprep.subr.bf16.mxu0 0
      %427 = vmatpush1.bf16.msra.mxu0 %v405
      %428 = vmatprep.subr.bf16.mxu0 0
      %429 = vmatpush1.bf16.msra.mxu0 %v404
      %430 = vmatprep.subr.bf16.mxu0 0
      %431 = vmatpush1.bf16.msra.mxu0 %v403
      %432 = vmatprep.subr.bf16.mxu0 0
      %433 = vmatpush1.bf16.msra.mxu0 %v402
      %434 = vmatprep.subr.bf16.mxu0 0
      %435 = vmatpush2.bf16.msra.mxu0 0
      %436 = vmatprep.subr.bf16.mxu0 0
      %437 = vmatpush2.bf16.msra.mxu0 0
      %438 = vmatprep.subr.bf16.mxu0 0
      %439 = vmatpush2.bf16.msra.mxu0 0
      %440 = vmatprep.subr.bf16.mxu0 0
      %441 = vmatpush2.bf16.msra.mxu0 0
      %442 = vmatprep.subr.bf16.mxu0 0
      %443 = vmatpush2.bf16.msra.mxu0 0
      %444 = vmatprep.subr.bf16.mxu0 0
      %445 = vmatpush2.bf16.msra.mxu0 0
      %446 = vmatprep.subr.bf16.mxu0 0
      %447 = vmatpush2.bf16.msra.mxu0 0
      %448 = vmatprep.subr.bf16.mxu0 0
      %449 = vmatpush2.bf16.msra.mxu0 0
      %450 = vmatprep.mubr.bf16.mxu0 0
      %451 = vmatmul.mubr.bf16.gmra.mxu0 %v368
      %v452 = vpop.f32.mrf.mxu0
      %v453 = vadd.f32 0.0, %v452
      %v454 = vpop.f32.mrf.mxu0
      %v455 = vpop.f32.mrf.mxu0
      %v456 = vpop.f32.mrf.mxu0
      %457 = vdwg.mxu0
      %v458 = vadd.f32 %v336, %v453
      %s459 = sadd.s32 %s228, 2
      %s460 = smul.u32 %s459, 16
      %s461 = smul.addr %s460, 4
      %s462 = scalar_lea.vmem %s1, %s461
      %v463 = vld [vmem:[%s462] sm:$0xf]
      %v464 = vld [vmem:[%s462 + $0x4] sm:$0xf]
      %v465 = vld [vmem:[%s462 + $0x8] sm:$0xf]
      %v466 = vld [vmem:[%s462 + $0xc] sm:$0xf]
      %v467 = vld [vmem:[%s462 + $0x10] sm:$0xf]
      %v468 = vld [vmem:[%s462 + $0x14] sm:$0xf]
      %v469 = vld [vmem:[%s462 + $0x18] sm:$0xf]
      %v470 = vld [vmem:[%s462 + $0x1c] sm:$0xf]
      %v471 = vld [vmem:[%s462 + $0x20] sm:$0xf]
      %v472 = vld [vmem:[%s462 + $0x24] sm:$0xf]
      %v473 = vld [vmem:[%s462 + $0x28] sm:$0xf]
      %v474 = vld [vmem:[%s462 + $0x2c] sm:$0xf]
      %v475 = vld [vmem:[%s462 + $0x30] sm:$0xf]
      %v476 = vld [vmem:[%s462 + $0x34] sm:$0xf]
      %v477 = vld [vmem:[%s462 + $0x38] sm:$0xf]
      %v478 = vld [vmem:[%s462 + $0x3c] sm:$0xf]
      %v479 = vrot.slane %v361, 1
      %v497 = vunpack.c.l.b16 %v463
      %v498 = vunpack.c.l.b16 %v464
      %v499 = vunpack.c.l.b16 %v465
      %v500 = vunpack.c.l.b16 %v466
      %v501 = vunpack.c.l.b16 %v467
      %v502 = vunpack.c.l.b16 %v468
      %v503 = vunpack.c.l.b16 %v469
      %v504 = vunpack.c.l.b16 %v470
      %v505 = vunpack.c.l.b16 %v471
      %v506 = vunpack.c.l.b16 %v472
      %v507 = vunpack.c.l.b16 %v473
      %v508 = vunpack.c.l.b16 %v474
      %v509 = vunpack.c.l.b16 %v475
      %v510 = vunpack.c.l.b16 %v476
      %v511 = vunpack.c.l.b16 %v477
      %v512 = vunpack.c.l.b16 %v478
      %v513 = vpack.c.b16 %v498, %v497
      %v514 = vpack.c.b16 %v500, %v499
      %v515 = vpack.c.b16 %v502, %v501
      %v516 = vpack.c.b16 %v504, %v503
      %v517 = vpack.c.b16 %v506, %v505
      %v518 = vpack.c.b16 %v508, %v507
      %v519 = vpack.c.b16 %v510, %v509
      %v520 = vpack.c.b16 %v512, %v511
      %529 = vmatprep.subr.bf16.mxu0 0
      %530 = vmatpush1.bf16.msra.mxu0 %v520
      %531 = vmatprep.subr.bf16.mxu0 0
      %532 = vmatpush1.bf16.msra.mxu0 %v519
      %533 = vmatprep.subr.bf16.mxu0 0
      %534 = vmatpush1.bf16.msra.mxu0 %v518
      %535 = vmatprep.subr.bf16.mxu0 0
      %536 = vmatpush1.bf16.msra.mxu0 %v517
      %537 = vmatprep.subr.bf16.mxu0 0
      %538 = vmatpush1.bf16.msra.mxu0 %v516
      %539 = vmatprep.subr.bf16.mxu0 0
      %540 = vmatpush1.bf16.msra.mxu0 %v515
      %541 = vmatprep.subr.bf16.mxu0 0
      %542 = vmatpush1.bf16.msra.mxu0 %v514
      %543 = vmatprep.subr.bf16.mxu0 0
      %544 = vmatpush1.bf16.msra.mxu0 %v513
      %545 = vmatprep.subr.bf16.mxu0 0
      %546 = vmatpush2.bf16.msra.mxu0 0
      %547 = vmatprep.subr.bf16.mxu0 0
      %548 = vmatpush2.bf16.msra.mxu0 0
      %549 = vmatprep.subr.bf16.mxu0 0
      %550 = vmatpush2.bf16.msra.mxu0 0
      %551 = vmatprep.subr.bf16.mxu0 0
      %552 = vmatpush2.bf16.msra.mxu0 0
      %553 = vmatprep.subr.bf16.mxu0 0
      %554 = vmatpush2.bf16.msra.mxu0 0
      %555 = vmatprep.subr.bf16.mxu0 0
      %556 = vmatpush2.bf16.msra.mxu0 0
      %557 = vmatprep.subr.bf16.mxu0 0
      %558 = vmatpush2.bf16.msra.mxu0 0
      %559 = vmatprep.subr.bf16.mxu0 0
      %560 = vmatpush2.bf16.msra.mxu0 0
      %561 = vmatprep.mubr.bf16.mxu0 0
      %562 = vmatmul.mubr.bf16.gmra.mxu0 %v479
      %v563 = vpop.f32.mrf.mxu0
      %v564 = vadd.f32 0.0, %v563
      %v565 = vpop.f32.mrf.mxu0
      %v566 = vpop.f32.mrf.mxu0
      %v567 = vpop.f32.mrf.mxu0
      %568 = vdwg.mxu0
      %v569 = vadd.f32 %v458, %v564
      %570 = vst [vmem:[#allocation2] sm:$0xff] %v569
      %p571 = scmp.eq.s32.totalorder %s21, 2
      // Predicated region
      $region37: #{bottleneck_forward.4} parent=31 // pred_check
        %p572 = pneg %p571
      $region38: #{bottleneck_forward.4} parent=31 // pred_check_branch
        %574 = sbr.rel (%p572) target = $region40
      $region39: #{bottleneck_forward.4} parent=31 // pred_region
        %v575 = vld [vmem:[%s2] sm:$0x1]
        %v577 = vlaneseq
        %v578 = vshrl.u32 %v577, 7
        %v579 = vsub.s32 0, %v578
        %v580 = vrot.slane %v575, %v579
        %v582 = vadd.f32 %v569, %v580
        %v583 = vmax.f32 %v582, 0.0
        %v584 = vpack.c.bf16 %v583, %v583
        %585 = vst [vmem:[%s218] sm:$0xf] %v584
      $region40: #{bottleneck_forward.4} parent=31 // pred_fallthru
        _
      %p586 = scmp.lt.s32.totalorder %s19, 1
      %s587 = scalar_select %p586, %s19, 1
      %p588 = scmp.lt.s32.totalorder %s20, 7
      %s589 = scalar_select %p588, %s20, 7
      %s590 = smul.addr %s587, 8
      %s591 = sadd.s32 %s589, %s590
      %s592 = smul.addr %s591, 4
      %s593 = scalar_lea.vmem %s3, %s592
      // Predicated region
      $region41: #{bottleneck_forward.4} parent=31 // pred_check
        %p594 = pneg %p125
      $region42: #{bottleneck_forward.4} parent=31 // pred_check_branch
        %596 = sbr.rel (%p594) target = $region44
      $region43: #{bottleneck_forward.4} parent=31 // pred_region
        _
      $region44: #{bottleneck_forward.4} parent=31 // pred_fallthru
        _
    $region32: #{bottleneck_forward.4} parent=5 // pred_fallthru
      _
    %p597 = scmp.le.s32.totalorder 2, %s9
    // Predicated region
    $region45: #{bottleneck_forward.4} parent=5 // pred_check
      %p598 = pneg %p597
    $region46: #{bottleneck_forward.4} parent=5 // pred_check_branch
      %600 = sbr.rel (%p598) target = $region48
    $region47: #{bottleneck_forward.4} parent=5 // pred_region
      %s601 = ssub.s32 %s9, 2
      // Predicated region
      $region49: #{bottleneck_forward.4} parent=47 // pred_check
        %p602 = pneg %p131
      $region50: #{bottleneck_forward.4} parent=47 // pred_check_branch
        %604 = sbr.rel (%p602) target = $region52
      $region51: #{bottleneck_forward.4} parent=47 // pred_region
        %p605 = scmp.lt.s32.totalorder %s22, 1
        %s606 = scalar_select %p605, %s22, 1
        %p607 = scmp.lt.s32.totalorder %s23, 7
        %s608 = scalar_select %p607, %s23, 7
        %s609 = smul.addr %s606, 8
        %s610 = sadd.s32 %s608, %s609
        %s611 = smul.addr %s610, 4
        %s612 = scalar_lea.vmem %s3, %s611
      $region52: #{bottleneck_forward.4} parent=47 // pred_fallthru
        _
    $region48: #{bottleneck_forward.4} parent=5 // pred_fallthru
      _
  $region6: #{bottleneck_forward.4} parent=0 // loop_footer
    %s13 = sadd.s32 1, %s9
  $region7: #{bottleneck_forward.4} parent=0 // loop_footer_branch
    %8 = sbr.rel target = $region3
  $region8: #{bottleneck_forward.4} parent=0 // loop_exit
    _

// kernel: bottleneck_forward.5
$region0: #{bottleneck_forward.5}
  #allocation0 [shape = 'u32[]', space=smem, size = 0x4, offset = 0x4, fixed_abs, tag = 'smem constant byte address 0x4 - core index']
  #allocation1 [shape = 'u32[144,128]{1,0:T(1,128)}', space=vmem, size = 0x12000, scoped, tag = 'internal scratch']
  #allocation2 [shape = 'f32[128,128]{1,0:T(8,128)}', space=vmem, size = 0x10000, scoped, tag = 'scratch operand']
  %s0 = inlined_call_operand.vmem [shape: bf16[128,128], index: 0, kind: input, shape index: {}]
  %s1 = inlined_call_operand.vmem [shape: bf16[128,128], index: 1, kind: input, shape index: {}]
  %s2 = inlined_call_operand.vmem [shape: f32[1,128], index: 2, kind: input, shape index: {}]
  %s3 = inlined_call_operand.vmem [shape: f32[128,128], index: 3, kind: input, shape index: {}]
  %s4 = inlined_call_operand.hbm [shape: f32[128,128], index: 4, kind: output, shape index: {}]
  %s5 = sld [smem:[#allocation0]]
  $region34: #{bottleneck_forward.5} parent=0
    _
  %s7 = ssub.s32 1, %s5
  %s8 = scalar_select 0, %s7, %s5
  $region1: #{bottleneck_forward.5} parent=0
    #allocation3 [shape = 'u8[65536]{0}', space=vmem, size = 0x10000, scoped, tag = 'output window, operand 0, single buffered']
    #allocation4 [shape = 's32[1]{0}', space=sflag, size = 0x4, scoped, tag = 'scoped memory for bottleneck_forward.5']
    %9 = vsyncpa [#allocation4], 0
    // Predicated region
    $region2: #{bottleneck_forward.5} parent=1 // pred_check
      _
    $region3: #{bottleneck_forward.5} parent=1 // pred_check_branch
      %11 = sbr.rel (0) target = $region5
    $region4: #{bottleneck_forward.5} parent=1 // pred_region
      _
    $region5: #{bottleneck_forward.5} parent=1 // pred_fallthru
      _
    // Predicated region
    $region6: #{bottleneck_forward.5} parent=1 // pred_check
      _
    $region7: #{bottleneck_forward.5} parent=1 // pred_check_branch
      %13 = sbr.rel (0) target = $region9
    $region8: #{bottleneck_forward.5} parent=1 // pred_region
      _
    $region9: #{bottleneck_forward.5} parent=1 // pred_fallthru
      _
    // Predicated region
    $region10: #{bottleneck_forward.5} parent=1 // pred_check
      _
    $region11: #{bottleneck_forward.5} parent=1 // pred_check_branch
      %15 = sbr.rel (0) target = $region13
    $region12: #{bottleneck_forward.5} parent=1 // pred_region
      _
    $region13: #{bottleneck_forward.5} parent=1 // pred_fallthru
      _
    // Predicated region
    $region14: #{bottleneck_forward.5} parent=1 // pred_check
      _
    $region15: #{bottleneck_forward.5} parent=1 // pred_check_branch
      %17 = sbr.rel (0) target = $region17
    $region16: #{bottleneck_forward.5} parent=1 // pred_region
      _
    $region17: #{bottleneck_forward.5} parent=1 // pred_fallthru
      _
    %p19 = scmp.eq.s32.totalorder 0, 0
    // Predicated region
    $region18: #{bottleneck_forward.5} parent=1 // pred_check
      %p20 = pneg %p19
    $region19: #{bottleneck_forward.5} parent=1 // pred_check_branch
      %22 = sbr.rel (%p20) target = $region21
    $region20: #{bottleneck_forward.5} parent=1 // pred_region
      %23 = vst [vmem:[#allocation2] sm:$0xff] 0.0
      %24 = vst [vmem:[#allocation2 + $0x8] sm:$0xff] 0.0
      %25 = vst [vmem:[#allocation2 + $0x10] sm:$0xff] 0.0
      %26 = vst [vmem:[#allocation2 + $0x18] sm:$0xff] 0.0
      %27 = vst [vmem:[#allocation2 + $0x20] sm:$0xff] 0.0
      %28 = vst [vmem:[#allocation2 + $0x28] sm:$0xff] 0.0
      %29 = vst [vmem:[#allocation2 + $0x30] sm:$0xff] 0.0
      %30 = vst [vmem:[#allocation2 + $0x38] sm:$0xff] 0.0
      %31 = vst [vmem:[#allocation2 + $0x40] sm:$0xff] 0.0
      %32 = vst [vmem:[#allocation2 + $0x48] sm:$0xff] 0.0
      %33 = vst [vmem:[#allocation2 + $0x50] sm:$0xff] 0.0
      %34 = vst [vmem:[#allocation2 + $0x58] sm:$0xff] 0.0
      %35 = vst [vmem:[#allocation2 + $0x60] sm:$0xff] 0.0
      %36 = vst [vmem:[#allocation2 + $0x68] sm:$0xff] 0.0
      %37 = vst [vmem:[#allocation2 + $0x70] sm:$0xff] 0.0
      %38 = vst [vmem:[#allocation2 + $0x78] sm:$0xff] 0.0
    $region21: #{bottleneck_forward.5} parent=1 // pred_fallthru
      _
    %v39 = vld [vmem:[#allocation2] sm:$0xff]
    %v40 = vld [vmem:[#allocation2 + $0x8] sm:$0xff]
    %v41 = vld [vmem:[#allocation2 + $0x10] sm:$0xff]
    %v42 = vld [vmem:[#allocation2 + $0x18] sm:$0xff]
    %v43 = vld [vmem:[#allocation2 + $0x20] sm:$0xff]
    %v44 = vld [vmem:[#allocation2 + $0x28] sm:$0xff]
    %v45 = vld [vmem:[#allocation2 + $0x30] sm:$0xff]
    %v46 = vld [vmem:[#allocation2 + $0x38] sm:$0xff]
    %v47 = vld [vmem:[#allocation2 + $0x40] sm:$0xff]
    %v48 = vld [vmem:[#allocation2 + $0x48] sm:$0xff]
    %v49 = vld [vmem:[#allocation2 + $0x50] sm:$0xff]
    %v50 = vld [vmem:[#allocation2 + $0x58] sm:$0xff]
    %v51 = vld [vmem:[#allocation2 + $0x60] sm:$0xff]
    %v52 = vld [vmem:[#allocation2 + $0x68] sm:$0xff]
    %v53 = vld [vmem:[#allocation2 + $0x70] sm:$0xff]
    %v54 = vld [vmem:[#allocation2 + $0x78] sm:$0xff]
    %v55 = vld [vmem:[%s0] sm:$0xf]
    %v56 = vld [vmem:[%s0 + $0x4] sm:$0xf]
    %v57 = vld [vmem:[%s0 + $0x8] sm:$0xf]
    %v58 = vld [vmem:[%s0 + $0xc] sm:$0xf]
    %v59 = vld [vmem:[%s0 + $0x10] sm:$0xf]
    %v60 = vld [vmem:[%s0 + $0x14] sm:$0xf]
    %v61 = vld [vmem:[%s0 + $0x18] sm:$0xf]
    %v62 = vld [vmem:[%s0 + $0x1c] sm:$0xf]
    %v63 = vld [vmem:[%s0 + $0x20] sm:$0xf]
    %v64 = vld [vmem:[%s0 + $0x24] sm:$0xf]
    %v65 = vld [vmem:[%s0 + $0x28] sm:$0xf]
    %v66 = vld [vmem:[%s0 + $0x2c] sm:$0xf]
    %v67 = vld [vmem:[%s0 + $0x30] sm:$0xf]
    %v68 = vld [vmem:[%s0 + $0x34] sm:$0xf]
    %v69 = vld [vmem:[%s0 + $0x38] sm:$0xf]
    %v70 = vld [vmem:[%s0 + $0x3c] sm:$0xf]
    %v71 = vld [vmem:[%s1] sm:$0xf]
    %v72 = vld [vmem:[%s1 + $0x4] sm:$0xf]
    %v73 = vld [vmem:[%s1 + $0x8] sm:$0xf]
    %v74 = vld [vmem:[%s1 + $0xc] sm:$0xf]
    %v75 = vld [vmem:[%s1 + $0x10] sm:$0xf]
    %v76 = vld [vmem:[%s1 + $0x14] sm:$0xf]
    %v77 = vld [vmem:[%s1 + $0x18] sm:$0xf]
    %v78 = vld [vmem:[%s1 + $0x1c] sm:$0xf]
    %v79 = vld [vmem:[%s1 + $0x20] sm:$0xf]
    %v80 = vld [vmem:[%s1 + $0x24] sm:$0xf]
    %v81 = vld [vmem:[%s1 + $0x28] sm:$0xf]
    %v82 = vld [vmem:[%s1 + $0x2c] sm:$0xf]
    %v83 = vld [vmem:[%s1 + $0x30] sm:$0xf]
    %v84 = vld [vmem:[%s1 + $0x34] sm:$0xf]
    %v85 = vld [vmem:[%s1 + $0x38] sm:$0xf]
    %v86 = vld [vmem:[%s1 + $0x3c] sm:$0xf]
    %v103 = vunpack.c.l.b16 %v55
    %v104 = vunpack.c.l.b16 %v56
    %v105 = vunpack.c.l.b16 %v57
    %v106 = vunpack.c.l.b16 %v58
    %v107 = vunpack.c.l.b16 %v59
    %v108 = vunpack.c.l.b16 %v60
    %v109 = vunpack.c.l.b16 %v61
    %v110 = vunpack.c.l.b16 %v62
    %v111 = vunpack.c.l.b16 %v63
    %v112 = vunpack.c.l.b16 %v64
    %v113 = vunpack.c.l.b16 %v65
    %v114 = vunpack.c.l.b16 %v66
    %v115 = vunpack.c.l.b16 %v67
    %v116 = vunpack.c.l.b16 %v68
    %v117 = vunpack.c.l.b16 %v69
    %v118 = vunpack.c.l.b16 %v70
    %v119 = vpack.c.b16 %v104, %v103
    %v120 = vpack.c.b16 %v106, %v105
    %v121 = vpack.c.b16 %v108, %v107
    %v122 = vpack.c.b16 %v110, %v109
    %v123 = vpack.c.b16 %v112, %v111
    %v124 = vpack.c.b16 %v114, %v113
    %v125 = vpack.c.b16 %v116, %v115
    %v126 = vpack.c.b16 %v118, %v117
    %v151 = vunpack.c.l.b16 %v71
    %v152 = vunpack.c.l.b16 %v72
    %v153 = vunpack.c.l.b16 %v73
    %v154 = vunpack.c.l.b16 %v74
    %v155 = vunpack.c.l.b16 %v75
    %v156 = vunpack.c.l.b16 %v76
    %v157 = vunpack.c.l.b16 %v77
    %v158 = vunpack.c.l.b16 %v78
    %v159 = vunpack.c.l.b16 %v79
    %v160 = vunpack.c.l.b16 %v80
    %v161 = vunpack.c.l.b16 %v81
    %v162 = vunpack.c.l.b16 %v82
    %v163 = vunpack.c.l.b16 %v83
    %v164 = vunpack.c.l.b16 %v84
    %v165 = vunpack.c.l.b16 %v85
    %v166 = vunpack.c.l.b16 %v86
    %v167 = vpack.c.b16 %v152, %v151
    %v168 = vpack.c.b16 %v154, %v153
    %v169 = vpack.c.b16 %v156, %v155
    %v170 = vpack.c.b16 %v158, %v157
    %v171 = vpack.c.b16 %v160, %v159
    %v172 = vpack.c.b16 %v162, %v161
    %v173 = vpack.c.b16 %v164, %v163
    %v174 = vpack.c.b16 %v166, %v165
    %183 = vmatprep.subr.bf16.mxu0 0
    %184 = vmatpush1.bf16.msra.mxu0 %v174
    %185 = vmatprep.subr.bf16.mxu0 0
    %186 = vmatpush1.bf16.msra.mxu0 %v173
    %187 = vmatprep.subr.bf16.mxu0 0
    %188 = vmatpush1.bf16.msra.mxu0 %v172
    %189 = vmatprep.subr.bf16.mxu0 0
    %190 = vmatpush1.bf16.msra.mxu0 %v171
    %191 = vmatprep.subr.bf16.mxu0 0
    %192 = vmatpush1.bf16.msra.mxu0 %v170
    %193 = vmatprep.subr.bf16.mxu0 0
    %194 = vmatpush1.bf16.msra.mxu0 %v169
    %195 = vmatprep.subr.bf16.mxu0 0
    %196 = vmatpush1.bf16.msra.mxu0 %v168
    %197 = vmatprep.subr.bf16.mxu0 0
    %198 = vmatpush1.bf16.msra.mxu0 %v167
    %199 = vmatprep.subr.bf16.mxu0 0
    %200 = vmatpush2.bf16.msra.mxu0 0
    %201 = vmatprep.subr.bf16.mxu0 0
    %202 = vmatpush2.bf16.msra.mxu0 0
    %203 = vmatprep.subr.bf16.mxu0 0
    %204 = vmatpush2.bf16.msra.mxu0 0
    %205 = vmatprep.subr.bf16.mxu0 0
    %206 = vmatpush2.bf16.msra.mxu0 0
    %207 = vmatprep.subr.bf16.mxu0 0
    %208 = vmatpush2.bf16.msra.mxu0 0
    %209 = vmatprep.subr.bf16.mxu0 0
    %210 = vmatpush2.bf16.msra.mxu0 0
    %211 = vmatprep.subr.bf16.mxu0 0
    %212 = vmatpush2.bf16.msra.mxu0 0
    %213 = vmatprep.subr.bf16.mxu0 0
    %214 = vmatpush2.bf16.msra.mxu0 0
    %215 = vmatprep.mubr.bf16.mxu0 0
    %216 = vmatmul.mubr.bf16.gmra.mxu0 %v119
    %v217 = vpop.f32.mrf.mxu0
    %v218 = vadd.f32 0.0, %v217
    %v219 = vpop.f32.mrf.mxu0
    %v220 = vpop.f32.mrf.mxu0
    %v221 = vadd.f32 0.0, %v220
    %v222 = vpop.f32.mrf.mxu0
    %223 = vmatprep.mubr.bf16.mxu0 0
    %224 = vmatmul.mubr.bf16.gmra.mxu0 %v120
    %v225 = vpop.f32.mrf.mxu0
    %v226 = vadd.f32 0.0, %v225
    %v227 = vpop.f32.mrf.mxu0
    %v228 = vpop.f32.mrf.mxu0
    %v229 = vadd.f32 0.0, %v228
    %v230 = vpop.f32.mrf.mxu0
    %231 = vmatprep.mubr.bf16.mxu0 0
    %232 = vmatmul.mubr.bf16.gmra.mxu0 %v121
    %v233 = vpop.f32.mrf.mxu0
    %v234 = vadd.f32 0.0, %v233
    %v235 = vpop.f32.mrf.mxu0
    %v236 = vpop.f32.mrf.mxu0
    %v237 = vadd.f32 0.0, %v236
    %v238 = vpop.f32.mrf.mxu0
    %239 = vmatprep.mubr.bf16.mxu0 0
    %240 = vmatmul.mubr.bf16.gmra.mxu0 %v122
    %v241 = vpop.f32.mrf.mxu0
    %v242 = vadd.f32 0.0, %v241
    %v243 = vpop.f32.mrf.mxu0
    %v244 = vpop.f32.mrf.mxu0
    %v245 = vadd.f32 0.0, %v244
    %v246 = vpop.f32.mrf.mxu0
    %247 = vmatprep.mubr.bf16.mxu0 0
    %248 = vmatmul.mubr.bf16.gmra.mxu0 %v123
    %v249 = vpop.f32.mrf.mxu0
    %v250 = vadd.f32 0.0, %v249
    %v251 = vpop.f32.mrf.mxu0
    %v252 = vpop.f32.mrf.mxu0
    %v253 = vadd.f32 0.0, %v252
    %v254 = vpop.f32.mrf.mxu0
    %255 = vmatprep.mubr.bf16.mxu0 0
    %256 = vmatmul.mubr.bf16.gmra.mxu0 %v124
    %v257 = vpop.f32.mrf.mxu0
    %v258 = vadd.f32 0.0, %v257
    %v259 = vpop.f32.mrf.mxu0
    %v260 = vpop.f32.mrf.mxu0
    %v261 = vadd.f32 0.0, %v260
    %v262 = vpop.f32.mrf.mxu0
    %263 = vmatprep.mubr.bf16.mxu0 0
    %264 = vmatmul.mubr.bf16.gmra.mxu0 %v125
    %v265 = vpop.f32.mrf.mxu0
    %v266 = vadd.f32 0.0, %v265
    %v267 = vpop.f32.mrf.mxu0
    %v268 = vpop.f32.mrf.mxu0
    %v269 = vadd.f32 0.0, %v268
    %v270 = vpop.f32.mrf.mxu0
    %271 = vmatprep.mubr.bf16.mxu0 0
    %272 = vmatmul.mubr.bf16.gmra.mxu0 %v126
    %v273 = vpop.f32.mrf.mxu0
    %v274 = vadd.f32 0.0, %v273
    %v275 = vpop.f32.mrf.mxu0
    %v276 = vpop.f32.mrf.mxu0
    %v277 = vadd.f32 0.0, %v276
    %v278 = vpop.f32.mrf.mxu0
    %279 = vdwg.mxu0
    %v280 = vadd.f32 %v39, %v218
    %v281 = vadd.f32 %v40, %v221
    %v282 = vadd.f32 %v41, %v226
    %v283 = vadd.f32 %v42, %v229
    %v284 = vadd.f32 %v43, %v234
    %v285 = vadd.f32 %v44, %v237
    %v286 = vadd.f32 %v45, %v242
    %v287 = vadd.f32 %v46, %v245
    %v288 = vadd.f32 %v47, %v250
    %v289 = vadd.f32 %v48, %v253
    %v290 = vadd.f32 %v49, %v258
    %v291 = vadd.f32 %v50, %v261
    %v292 = vadd.f32 %v51, %v266
    %v293 = vadd.f32 %v52, %v269
    %v294 = vadd.f32 %v53, %v274
    %v295 = vadd.f32 %v54, %v277
    %296 = vst [vmem:[#allocation2] sm:$0xff] %v280
    %297 = vst [vmem:[#allocation2 + $0x8] sm:$0xff] %v281
    %298 = vst [vmem:[#allocation2 + $0x10] sm:$0xff] %v282
    %299 = vst [vmem:[#allocation2 + $0x18] sm:$0xff] %v283
    %300 = vst [vmem:[#allocation2 + $0x20] sm:$0xff] %v284
    %301 = vst [vmem:[#allocation2 + $0x28] sm:$0xff] %v285
    %302 = vst [vmem:[#allocation2 + $0x30] sm:$0xff] %v286
    %303 = vst [vmem:[#allocation2 + $0x38] sm:$0xff] %v287
    %304 = vst [vmem:[#allocation2 + $0x40] sm:$0xff] %v288
    %305 = vst [vmem:[#allocation2 + $0x48] sm:$0xff] %v289
    %306 = vst [vmem:[#allocation2 + $0x50] sm:$0xff] %v290
    %307 = vst [vmem:[#allocation2 + $0x58] sm:$0xff] %v291
    %308 = vst [vmem:[#allocation2 + $0x60] sm:$0xff] %v292
    %309 = vst [vmem:[#allocation2 + $0x68] sm:$0xff] %v293
    %310 = vst [vmem:[#allocation2 + $0x70] sm:$0xff] %v294
    %311 = vst [vmem:[#allocation2 + $0x78] sm:$0xff] %v295
    // Predicated region
    $region22: #{bottleneck_forward.5} parent=1 // pred_check
      %p312 = pneg %p19
    $region23: #{bottleneck_forward.5} parent=1 // pred_check_branch
      %314 = sbr.rel (%p312) target = $region25
    $region24: #{bottleneck_forward.5} parent=1 // pred_region
      %v315 = vld [vmem:[#allocation2] sm:$0xff]
      %v316 = vld [vmem:[#allocation2 + $0x8] sm:$0xff]
      %v317 = vld [vmem:[#allocation2 + $0x10] sm:$0xff]
      %v318 = vld [vmem:[#allocation2 + $0x18] sm:$0xff]
      %v319 = vld [vmem:[#allocation2 + $0x20] sm:$0xff]
      %v320 = vld [vmem:[#allocation2 + $0x28] sm:$0xff]
      %v321 = vld [vmem:[#allocation2 + $0x30] sm:$0xff]
      %v322 = vld [vmem:[#allocation2 + $0x38] sm:$0xff]
      %v323 = vld [vmem:[#allocation2 + $0x40] sm:$0xff]
      %v324 = vld [vmem:[#allocation2 + $0x48] sm:$0xff]
      %v325 = vld [vmem:[#allocation2 + $0x50] sm:$0xff]
      %v326 = vld [vmem:[#allocation2 + $0x58] sm:$0xff]
      %v327 = vld [vmem:[#allocation2 + $0x60] sm:$0xff]
      %v328 = vld [vmem:[#allocation2 + $0x68] sm:$0xff]
      %v329 = vld [vmem:[#allocation2 + $0x70] sm:$0xff]
      %v330 = vld [vmem:[#allocation2 + $0x78] sm:$0xff]
      %v331 = vld [vmem:[%s2] sm:$0x1]
      %v333 = vlaneseq
      %v334 = vshrl.u32 %v333, 7
      %v335 = vsub.s32 0, %v334
      %v336 = vrot.slane %v331, %v335
      %v338 = vadd.f32 %v315, %v336
      %v339 = vadd.f32 %v316, %v336
      %v340 = vadd.f32 %v317, %v336
      %v341 = vadd.f32 %v318, %v336
      %v342 = vadd.f32 %v319, %v336
      %v343 = vadd.f32 %v320, %v336
      %v344 = vadd.f32 %v321, %v336
      %v345 = vadd.f32 %v322, %v336
      %v346 = vadd.f32 %v323, %v336
      %v347 = vadd.f32 %v324, %v336
      %v348 = vadd.f32 %v325, %v336
      %v349 = vadd.f32 %v326, %v336
      %v350 = vadd.f32 %v327, %v336
      %v351 = vadd.f32 %v328, %v336
      %v352 = vadd.f32 %v329, %v336
      %v353 = vadd.f32 %v330, %v336
      %v354 = vld [vmem:[%s3] sm:$0xff]
      %v355 = vld [vmem:[%s3 + $0x8] sm:$0xff]
      %v356 = vld [vmem:[%s3 + $0x10] sm:$0xff]
      %v357 = vld [vmem:[%s3 + $0x18] sm:$0xff]
      %v358 = vld [vmem:[%s3 + $0x20] sm:$0xff]
      %v359 = vld [vmem:[%s3 + $0x28] sm:$0xff]
      %v360 = vld [vmem:[%s3 + $0x30] sm:$0xff]
      %v361 = vld [vmem:[%s3 + $0x38] sm:$0xff]
      %v362 = vld [vmem:[%s3 + $0x40] sm:$0xff]
      %v363 = vld [vmem:[%s3 + $0x48] sm:$0xff]
      %v364 = vld [vmem:[%s3 + $0x50] sm:$0xff]
      %v365 = vld [vmem:[%s3 + $0x58] sm:$0xff]
      %v366 = vld [vmem:[%s3 + $0x60] sm:$0xff]
      %v367 = vld [vmem:[%s3 + $0x68] sm:$0xff]
      %v368 = vld [vmem:[%s3 + $0x70] sm:$0xff]
      %v369 = vld [vmem:[%s3 + $0x78] sm:$0xff]
      %v370 = vadd.f32 %v338, %v354
      %v371 = vadd.f32 %v339, %v355
      %v372 = vadd.f32 %v340, %v356
      %v373 = vadd.f32 %v341, %v357
      %v374 = vadd.f32 %v342, %v358
      %v375 = vadd.f32 %v343, %v359
      %v376 = vadd.f32 %v344, %v360
      %v377 = vadd.f32 %v345, %v361
      %v378 = vadd.f32 %v346, %v362
      %v379 = vadd.f32 %v347, %v363
      %v380 = vadd.f32 %v348, %v364
      %v381 = vadd.f32 %v349, %v365
      %v382 = vadd.f32 %v350, %v366
      %v383 = vadd.f32 %v351, %v367
      %v384 = vadd.f32 %v352, %v368
      %v385 = vadd.f32 %v353, %v369
      %v386 = vmax.f32 %v370, 0.0
      %v387 = vmax.f32 %v371, 0.0
      %v388 = vmax.f32 %v372, 0.0
      %v389 = vmax.f32 %v373, 0.0
      %v390 = vmax.f32 %v374, 0.0
      %v391 = vmax.f32 %v375, 0.0
      %v392 = vmax.f32 %v376, 0.0
      %v393 = vmax.f32 %v377, 0.0
      %v394 = vmax.f32 %v378, 0.0
      %v395 = vmax.f32 %v379, 0.0
      %v396 = vmax.f32 %v380, 0.0
      %v397 = vmax.f32 %v381, 0.0
      %v398 = vmax.f32 %v382, 0.0
      %v399 = vmax.f32 %v383, 0.0
      %v400 = vmax.f32 %v384, 0.0
      %v401 = vmax.f32 %v385, 0.0
      %402 = vst [vmem:[#allocation3] sm:$0xff] %v386
      %403 = vst [vmem:[#allocation3 + $0x8] sm:$0xff] %v387
      %404 = vst [vmem:[#allocation3 + $0x10] sm:$0xff] %v388
      %405 = vst [vmem:[#allocation3 + $0x18] sm:$0xff] %v389
      %406 = vst [vmem:[#allocation3 + $0x20] sm:$0xff] %v390
      %407 = vst [vmem:[#allocation3 + $0x28] sm:$0xff] %v391
      %408 = vst [vmem:[#allocation3 + $0x30] sm:$0xff] %v392
      %409 = vst [vmem:[#allocation3 + $0x38] sm:$0xff] %v393
      %410 = vst [vmem:[#allocation3 + $0x40] sm:$0xff] %v394
      %411 = vst [vmem:[#allocation3 + $0x48] sm:$0xff] %v395
      %412 = vst [vmem:[#allocation3 + $0x50] sm:$0xff] %v396
      %413 = vst [vmem:[#allocation3 + $0x58] sm:$0xff] %v397
      %414 = vst [vmem:[#allocation3 + $0x60] sm:$0xff] %v398
      %415 = vst [vmem:[#allocation3 + $0x68] sm:$0xff] %v399
      %416 = vst [vmem:[#allocation3 + $0x70] sm:$0xff] %v400
      %417 = vst [vmem:[#allocation3 + $0x78] sm:$0xff] %v401
    $region25: #{bottleneck_forward.5} parent=1 // pred_fallthru
      _
    // Predicated region
    $region26: #{bottleneck_forward.5} parent=1 // pred_check
      _
    $region27: #{bottleneck_forward.5} parent=1 // pred_check_branch
      %419 = sbr.rel (0) target = $region29
    $region28: #{bottleneck_forward.5} parent=1 // pred_region
      %s421 = ssub.s32 2048, 2048
      %422 = vsyncadd [#allocation4], %s421
      %s423 = sshll.u32 [#allocation3], 4
      %s424 = int_to_ptr.vmem [resolvable:$true] %s423
      %429 = dma.vmem_to_hbm [thread:$0]  %s424, 2048, %s4, [#allocation4], 128, 128, 8
    $region29: #{bottleneck_forward.5} parent=1 // pred_fallthru
      _
    // Predicated region
    $region30: #{bottleneck_forward.5} parent=1 // pred_check
      _
    $region31: #{bottleneck_forward.5} parent=1 // pred_check_branch
      %431 = sbr.rel (0) target = $region33
    $region32: #{bottleneck_forward.5} parent=1 // pred_region
      %432 = dma.done [#allocation4], 2048
    $region33: #{bottleneck_forward.5} parent=1 // pred_fallthru
      _
    %433 = vsyncpa [#allocation4], 1

</llo_original>
